<compile_context>
chip_gen: v5e
topology: v5e:2x2
jax: 0.10.0
libtpu: 0.0.40
codegen_flags: <defaults>
</compile_context>

<pallas_src>
import numpy as np
import jax
import jax.numpy as jnp
from jax.experimental import pallas as pl
from jax.experimental.pallas import tpu as pltpu

ENCODED_DIM = 8      # encoded_space_dim
FC2_DIM = 32         # fc2_input_dim
C1, L1 = 16, 256     # unflatten target (channels, length)
C2 = 8               # conv1 output channels
N_PHASES = 4         # final output length = 4 * L1 = 1024


def _shift_left(v):
    """v[:, m] -> v[:, m + 1], zero-padded at the last lane.

    NOTE: pltpu.roll(v, -1, axis=1) + a last-lane mask is the XLU alternative;
    the slice+concat form is kept because its semantics are unambiguous and it
    lowers to the same static lane-shift for shift == 1 (2 uses per grid step).
    """
    zero = jnp.zeros((v.shape[0], 1), dtype=v.dtype)
    return jnp.concatenate([v[:, 1:], zero], axis=1)


def decoder_kernel(x_ref, w1_ref, b1_ref, w2_ref, b2_ref,
                   wa_ref, ba_ref, wb_ref, bb_ref,
                   out_ref, in1_ref):
    """One batch tile of TB samples.

    x_ref : (TB, E)            w1_ref: (E, H)          b1_ref: (1, H)
    w2_ref: (H, 16*256)        b2_ref: (1, 16*256)
    wa_ref: (3*C2*TB, C1*TB)   kron(stacked ConvT-A taps, I_TB)
    ba_ref: (C2*TB, 1)         ConvT-A bias repeated per sample
    wb_ref: (4*TB, 3*C2*TB)    kron(ConvT-B phase-mixing matrix, I_TB)
    bb_ref: (1, 1)             ConvT-B bias
    out_ref: (TB, 4*256)       4 output phases per sample, lane-dense
    in1_ref: (C1*TB, 256)      VMEM scratch, row = c*TB + b (channel-major)
    """
    f32 = jnp.float32
    tb = x_ref.shape[0]

    # ------------- decoder_lin: Linear -> ReLU -> Linear -> ReLU (batched) ----
    h1 = jnp.dot(x_ref[...], w1_ref[...], preferred_element_type=f32) + b1_ref[...]
    h1 = jnp.maximum(h1, 0.0)                                     # (TB, H)
    h2 = jnp.dot(h1, w2_ref[...], preferred_element_type=f32) + b2_ref[...]
    h2 = jnp.maximum(h2, 0.0)                                     # (TB, 4096)

    # Unflatten: in1[c*TB + b, m] = h2[b, c*256 + m]  (vreg-aligned 256-lane
    # slices, unmasked (TB,256) stores).
    for c in range(C1):
        in1_ref[pl.ds(c * tb, tb), :] = h2[:, c * L1:(c + 1) * L1]
    x1 = in1_ref[...]                                             # (C1*TB, 256)

    # ---- ConvTranspose1d(16->8, k=3, s=2, p=1, op=1) + ReLU, whole tile ------
    # y[(k*C2 + o)*TB + b, m] = sum_c Wa[c, o, k] * in1[b, c, m]
    y = jnp.dot(wa_ref[...], x1, preferred_element_type=f32)      # (3*C2*TB, 256)
    n = C2 * tb
    tap0 = y[0:n, :]
    tap1 = y[n:2 * n, :]
    tap2 = y[2 * n:3 * n, :]
    ba = ba_ref[...]                                              # (C2*TB, 1)
    e1 = jnp.maximum(tap1 + ba, 0.0)                              # even positions
    o1 = jnp.maximum(_shift_left(tap0) + tap2 + ba, 0.0)          # odd positions

    # ---- ConvTranspose1d(8->1, k=3, s=2, p=1, op=1) + tanh, whole tile -------
    # p[r*TB + b, m] = output phase r (of 4) of sample b at position m
    z = jnp.concatenate([e1, o1, _shift_left(e1)], axis=0)        # (3*C2*TB, 256)
    p = jnp.dot(wb_ref[...], z, preferred_element_type=f32) + bb_ref[...]
    p = jnp.tanh(p)                                               # (4*TB, 256)

    # lane-dense store: out[b, r*256 + m] = p[r*TB + b, m]
    for r in range(N_PHASES):
        out_ref[:, pl.ds(r * L1, L1)] = p[r * tb:(r + 1) * tb, :]


def pack_params(lin1_w, lin1_b, lin2_w, lin2_b,
                convA_w, convA_b, convB_w, convB_b, tb):
    """Rearrange PyTorch-layout parameters into kernel layouts (JAX glue)."""
    eye = jnp.eye(tb, dtype=jnp.float32)

    w1 = lin1_w.T                                   # (E, H)
    b1 = lin1_b.reshape(1, -1)                      # (1, H)
    w2 = lin2_w.T                                   # (H, 4096)
    b2 = lin2_b.reshape(1, -1)                      # (1, 4096)

    # ConvT-A: stack the 3 taps -> (3*C2, C1) with row = k*C2 + o, col = c,
    # then block-expand over the batch tile (batch rides on sublanes).
    wa_taps = jnp.transpose(convA_w, (2, 1, 0)).reshape(3 * C2, C1)
    wa_big = jnp.kron(wa_taps, eye)                 # (3*C2*tb, C1*tb)
    ba_big = jnp.repeat(convA_b, tb).reshape(C2 * tb, 1)

    # ConvT-B: the 4 output phases as linear combinations of [e1; o1; shl(e1)].
    wbt = jnp.transpose(convB_w, (2, 1, 0)).reshape(3, C2)   # wbt[k, o]
    cm = jnp.zeros((N_PHASES, 3 * C2), jnp.float32)
    cm = cm.at[0, 0 * C2:1 * C2].set(wbt[1])        # p0 = wb1 . e1
    cm = cm.at[1, 0 * C2:1 * C2].set(wbt[2])        # p1 = wb0 . o1 + wb2 . e1
    cm = cm.at[1, 1 * C2:2 * C2].set(wbt[0])
    cm = cm.at[2, 1 * C2:2 * C2].set(wbt[1])        # p2 = wb1 . o1
    cm = cm.at[3, 1 * C2:2 * C2].set(wbt[2])        # p3 = wb0 . shl(e1) + wb2 . o1
    cm = cm.at[3, 2 * C2:3 * C2].set(wbt[0])
    wb_big = jnp.kron(cm, eye)                      # (4*tb, 3*C2*tb)
    bb = convB_b.reshape(1, 1)
    return w1, b1, w2, b2, wa_big, ba_big, wb_big, bb


def decoder_forward(x, lin1_w, lin1_b, lin2_w, lin2_b,
                    convA_w, convA_b, convB_w, convB_b, *, tb=8):
    """Full Decoder forward. `tb` (batch tile) must be a multiple of 8."""
    w1, b1, w2, b2, wa_big, ba_big, wb_big, bb = pack_params(
        lin1_w, lin1_b, lin2_w, lin2_b, convA_w, convA_b, convB_w, convB_b, tb)

    B = x.shape[0]
    b_pad = pl.cdiv(B, tb) * tb
    if b_pad != B:
        x = jnp.pad(x, ((0, b_pad - B), (0, 0)))

    def full(a):
        return pl.BlockSpec(a.shape, lambda i: (0, 0))

    phases = pl.pallas_call(
        decoder_kernel,
        out_shape=jax.ShapeDtypeStruct((b_pad, N_PHASES * L1), jnp.float32),
        grid=(b_pad // tb,),
        in_specs=[
            pl.BlockSpec((tb, ENCODED_DIM), lambda i: (i, 0)),
            full(w1), full(b1), full(w2), full(b2),
            full(wa_big), full(ba_big), full(wb_big), full(bb),
        ],
        out_specs=pl.BlockSpec((tb, N_PHASES * L1), lambda i: (i, 0)),
        scratch_shapes=[pltpu.VMEM((C1 * tb, L1), jnp.float32)],
        compiler_params=pltpu.CompilerParams(
            dimension_semantics=("parallel",)),
    )(x, w1, b1, w2, b2, wa_big, ba_big, wb_big, bb)

    # phase interleave (glue): y[b, 0, 4*m + r] = phases[b, r*256 + m]
    phases = phases[:B].reshape(B, N_PHASES, L1)
    return jnp.transpose(phases, (0, 2, 1)).reshape(B, 1, N_PHASES * L1)


# ----------------------------- numpy reference --------------------------------
def np_conv_transpose1d(x, w, bias, stride, padding, output_padding):
    B, Cin, L = x.shape
    _, Cout, K = w.shape
    Lout = (L - 1) * stride - 2 * padding + K + output_padding
    out = np.zeros((B, Cout, Lout), np.float64)
    for i in range(L):
        for k in range(K):
            l = i * stride - padding + k
            if 0 <= l < Lout:
                out[:, :, l] += x[:, :, i] @ w[:, :, k]
    return out + bias[None, :, None]


def np_reference(x, lin1_w, lin1_b, lin2_w, lin2_b,
                 convA_w, convA_b, convB_w, convB_b):
    f = lambda a: np.asarray(a, np.float64)
    h = np.maximum(f(x) @ f(lin1_w).T + f(lin1_b), 0.0)
    h = np.maximum(h @ f(lin2_w).T + f(lin2_b), 0.0)
    h = h.reshape(x.shape[0], C1, L1)
    h = np.maximum(np_conv_transpose1d(h, f(convA_w), f(convA_b), 2, 1, 1), 0.0)
    h = np_conv_transpose1d(h, f(convB_w), f(convB_b), 2, 1, 1)
    return np.tanh(h)


if __name__ == "__main__":
    key = jax.random.PRNGKey(0)
    ks = jax.random.split(key, 9)

    # deterministic parameter init (PyTorch storage layouts, synthetic values)
    lin1_w = jax.random.normal(ks[0], (FC2_DIM, ENCODED_DIM), jnp.float32) / np.sqrt(ENCODED_DIM)
    lin1_b = jax.random.normal(ks[1], (FC2_DIM,), jnp.float32) * 0.1
    lin2_w = jax.random.normal(ks[2], (C1 * L1, FC2_DIM), jnp.float32) / np.sqrt(FC2_DIM)
    lin2_b = jax.random.normal(ks[3], (C1 * L1,), jnp.float32) * 0.1
    convA_w = jax.random.normal(ks[4], (C1, C2, 3), jnp.float32) / np.sqrt(C1 * 3)
    convA_b = jax.random.normal(ks[5], (C2,), jnp.float32) * 0.1
    convB_w = jax.random.normal(ks[6], (C2, 1, 3), jnp.float32) / np.sqrt(C2 * 3)
    convB_b = jax.random.normal(ks[7], (1,), jnp.float32) * 0.1

    x = jax.random.normal(ks[8], (2, ENCODED_DIM), jnp.float32)

    y = decoder_forward(x, lin1_w, lin1_b, lin2_w, lin2_b,
                        convA_w, convA_b, convB_w, convB_b, tb=8)
    y = jax.block_until_ready(y)
    assert y.shape == (2, 1, 1024), y.shape

    y_ref = np_reference(x, lin1_w, lin1_b, lin2_w, lin2_b,
                         convA_w, convA_b, convB_w, convB_b)
    err = float(np.max(np.abs(np.asarray(y, np.float64) - y_ref)))
    assert np.allclose(np.asarray(y, np.float64), y_ref, atol=3e-2, rtol=3e-2), err

    print("KERNEL_OK")
</pallas_src>

<mosaic_0001>
module attributes {stable_mosaic.version = 11 : i64} {
  func.func @decoder_kernel(%arg0: i32, %arg1: memref<8x8xf32, #tpu.memory_space<vmem>>, %arg2: memref<8x32xf32, #tpu.memory_space<vmem>>, %arg3: memref<1x32xf32, #tpu.memory_space<vmem>>, %arg4: memref<32x4096xf32, #tpu.memory_space<vmem>>, %arg5: memref<1x4096xf32, #tpu.memory_space<vmem>>, %arg6: memref<192x128xf32, #tpu.memory_space<vmem>>, %arg7: memref<64x1xf32, #tpu.memory_space<vmem>>, %arg8: memref<32x192xf32, #tpu.memory_space<vmem>>, %arg9: memref<1x1xf32, #tpu.memory_space<vmem>>, %arg10: memref<8x1024xf32, #tpu.memory_space<vmem>>, %arg11: memref<128x256xf32, #tpu.memory_space<vmem>>) attributes {dimension_semantics = [#tpu.dimension_semantics<parallel>], iteration_bounds = array<i64: 1>, scalar_prefetch = 0 : i64, scratch_operands = 1 : i64, tpu.core_type = #tpu.core_type<tc>, window_params = [{transform_indices = @transform_0, window_bounds = array<i64: 8, 8>}, {pipeline_mode = #tpu.pipeline_mode<synchronous>, transform_indices = @transform_1, window_bounds = array<i64: 8, 32>}, {pipeline_mode = #tpu.pipeline_mode<synchronous>, transform_indices = @transform_2, window_bounds = array<i64: 1, 32>}, {pipeline_mode = #tpu.pipeline_mode<synchronous>, transform_indices = @transform_3, window_bounds = array<i64: 32, 4096>}, {pipeline_mode = #tpu.pipeline_mode<synchronous>, transform_indices = @transform_4, window_bounds = array<i64: 1, 4096>}, {pipeline_mode = #tpu.pipeline_mode<synchronous>, transform_indices = @transform_5, window_bounds = array<i64: 192, 128>}, {pipeline_mode = #tpu.pipeline_mode<synchronous>, transform_indices = @transform_6, window_bounds = array<i64: 64, 1>}, {pipeline_mode = #tpu.pipeline_mode<synchronous>, transform_indices = @transform_7, window_bounds = array<i64: 32, 192>}, {pipeline_mode = #tpu.pipeline_mode<synchronous>, transform_indices = @transform_8, window_bounds = array<i64: 1, 1>}, {transform_indices = @transform_9, window_bounds = array<i64: 8, 1024>}]} {
    %c0 = arith.constant 0 : index
    %c0_0 = arith.constant 0 : index
    %0 = vector.load %arg1[%c0, %c0_0] : memref<8x8xf32, #tpu.memory_space<vmem>>, vector<8x8xf32>
    %c0_1 = arith.constant 0 : index
    %c0_2 = arith.constant 0 : index
    %1 = vector.load %arg2[%c0_1, %c0_2] : memref<8x32xf32, #tpu.memory_space<vmem>>, vector<8x32xf32>
    %cst = arith.constant dense<0.000000e+00> : vector<8x32xf32>
    %2 = tpu.matmul %0, %1, %cst {dimension_numbers = #tpu.dot_dimension_numbers<[1], [0], [0], [1], [0, 0, 1, 1], [], []>} : vector<8x8xf32>, vector<8x32xf32>, vector<8x32xf32> -> vector<8x32xf32>
    %c0_3 = arith.constant 0 : index
    %c0_4 = arith.constant 0 : index
    %3 = vector.load %arg3[%c0_3, %c0_4] : memref<1x32xf32, #tpu.memory_space<vmem>>, vector<1x32xf32>
    %4 = vector.broadcast %3 : vector<1x32xf32> to vector<8x32xf32>
    %5 = arith.addf %2, %4 : vector<8x32xf32>
    %cst_5 = arith.constant 0.000000e+00 : f32
    %6 = vector.broadcast %cst_5 : f32 to vector<8x32xf32>
    %7 = arith.maximumf %5, %6 : vector<8x32xf32>
    %c0_6 = arith.constant 0 : index
    %c0_7 = arith.constant 0 : index
    %8 = vector.load %arg4[%c0_6, %c0_7] : memref<32x4096xf32, #tpu.memory_space<vmem>>, vector<32x4096xf32>
    %cst_8 = arith.constant dense<0.000000e+00> : vector<8x4096xf32>
    %9 = tpu.matmul %7, %8, %cst_8 {dimension_numbers = #tpu.dot_dimension_numbers<[1], [0], [0], [1], [0, 0, 1, 1], [], []>} : vector<8x32xf32>, vector<32x4096xf32>, vector<8x4096xf32> -> vector<8x4096xf32>
    %c0_9 = arith.constant 0 : index
    %c0_10 = arith.constant 0 : index
    %10 = vector.load %arg5[%c0_9, %c0_10] : memref<1x4096xf32, #tpu.memory_space<vmem>>, vector<1x4096xf32>
    %11 = vector.broadcast %10 : vector<1x4096xf32> to vector<8x4096xf32>
    %12 = arith.addf %9, %11 : vector<8x4096xf32>
    %cst_11 = arith.constant 0.000000e+00 : f32
    %13 = vector.broadcast %cst_11 : f32 to vector<8x4096xf32>
    %14 = arith.maximumf %12, %13 : vector<8x4096xf32>
    %15 = vector.extract_strided_slice %14 {offsets = [0, 0], sizes = [8, 256], strides = [1, 1]} : vector<8x4096xf32> to vector<8x256xf32>
    %c0_12 = arith.constant 0 : index
    %c0_13 = arith.constant 0 : index
    %16 = vector.load %arg11[%c0_12, %c0_13] : memref<128x256xf32, #tpu.memory_space<vmem>>, vector<8x256xf32>
    tpu.vector_store %arg11[%c0_12, %c0_13], %15 {strides = array<i32>} : memref<128x256xf32, #tpu.memory_space<vmem>>, vector<8x256xf32>,
    %17 = vector.extract_strided_slice %14 {offsets = [0, 256], sizes = [8, 256], strides = [1, 1]} : vector<8x4096xf32> to vector<8x256xf32>
    %c8 = arith.constant 8 : index
    %c0_14 = arith.constant 0 : index
    %18 = vector.load %arg11[%c8, %c0_14] : memref<128x256xf32, #tpu.memory_space<vmem>>, vector<8x256xf32>
    tpu.vector_store %arg11[%c8, %c0_14], %17 {strides = array<i32>} : memref<128x256xf32, #tpu.memory_space<vmem>>, vector<8x256xf32>,
    %19 = vector.extract_strided_slice %14 {offsets = [0, 512], sizes = [8, 256], strides = [1, 1]} : vector<8x4096xf32> to vector<8x256xf32>
    %c16 = arith.constant 16 : index
    %c0_15 = arith.constant 0 : index
    %20 = vector.load %arg11[%c16, %c0_15] : memref<128x256xf32, #tpu.memory_space<vmem>>, vector<8x256xf32>
    tpu.vector_store %arg11[%c16, %c0_15], %19 {strides = array<i32>} : memref<128x256xf32, #tpu.memory_space<vmem>>, vector<8x256xf32>,
    %21 = vector.extract_strided_slice %14 {offsets = [0, 768], sizes = [8, 256], strides = [1, 1]} : vector<8x4096xf32> to vector<8x256xf32>
    %c24 = arith.constant 24 : index
    %c0_16 = arith.constant 0 : index
    %22 = vector.load %arg11[%c24, %c0_16] : memref<128x256xf32, #tpu.memory_space<vmem>>, vector<8x256xf32>
    tpu.vector_store %arg11[%c24, %c0_16], %21 {strides = array<i32>} : memref<128x256xf32, #tpu.memory_space<vmem>>, vector<8x256xf32>,
    %23 = vector.extract_strided_slice %14 {offsets = [0, 1024], sizes = [8, 256], strides = [1, 1]} : vector<8x4096xf32> to vector<8x256xf32>
    %c32 = arith.constant 32 : index
    %c0_17 = arith.constant 0 : index
    %24 = vector.load %arg11[%c32, %c0_17] : memref<128x256xf32, #tpu.memory_space<vmem>>, vector<8x256xf32>
    tpu.vector_store %arg11[%c32, %c0_17], %23 {strides = array<i32>} : memref<128x256xf32, #tpu.memory_space<vmem>>, vector<8x256xf32>,
    %25 = vector.extract_strided_slice %14 {offsets = [0, 1280], sizes = [8, 256], strides = [1, 1]} : vector<8x4096xf32> to vector<8x256xf32>
    %c40 = arith.constant 40 : index
    %c0_18 = arith.constant 0 : index
    %26 = vector.load %arg11[%c40, %c0_18] : memref<128x256xf32, #tpu.memory_space<vmem>>, vector<8x256xf32>
    tpu.vector_store %arg11[%c40, %c0_18], %25 {strides = array<i32>} : memref<128x256xf32, #tpu.memory_space<vmem>>, vector<8x256xf32>,
    %27 = vector.extract_strided_slice %14 {offsets = [0, 1536], sizes = [8, 256], strides = [1, 1]} : vector<8x4096xf32> to vector<8x256xf32>
    %c48 = arith.constant 48 : index
    %c0_19 = arith.constant 0 : index
    %28 = vector.load %arg11[%c48, %c0_19] : memref<128x256xf32, #tpu.memory_space<vmem>>, vector<8x256xf32>
    tpu.vector_store %arg11[%c48, %c0_19], %27 {strides = array<i32>} : memref<128x256xf32, #tpu.memory_space<vmem>>, vector<8x256xf32>,
    %29 = vector.extract_strided_slice %14 {offsets = [0, 1792], sizes = [8, 256], strides = [1, 1]} : vector<8x4096xf32> to vector<8x256xf32>
    %c56 = arith.constant 56 : index
    %c0_20 = arith.constant 0 : index
    %30 = vector.load %arg11[%c56, %c0_20] : memref<128x256xf32, #tpu.memory_space<vmem>>, vector<8x256xf32>
    tpu.vector_store %arg11[%c56, %c0_20], %29 {strides = array<i32>} : memref<128x256xf32, #tpu.memory_space<vmem>>, vector<8x256xf32>,
    %31 = vector.extract_strided_slice %14 {offsets = [0, 2048], sizes = [8, 256], strides = [1, 1]} : vector<8x4096xf32> to vector<8x256xf32>
    %c64 = arith.constant 64 : index
    %c0_21 = arith.constant 0 : index
    %32 = vector.load %arg11[%c64, %c0_21] : memref<128x256xf32, #tpu.memory_space<vmem>>, vector<8x256xf32>
    tpu.vector_store %arg11[%c64, %c0_21], %31 {strides = array<i32>} : memref<128x256xf32, #tpu.memory_space<vmem>>, vector<8x256xf32>,
    %33 = vector.extract_strided_slice %14 {offsets = [0, 2304], sizes = [8, 256], strides = [1, 1]} : vector<8x4096xf32> to vector<8x256xf32>
    %c72 = arith.constant 72 : index
    %c0_22 = arith.constant 0 : index
    %34 = vector.load %arg11[%c72, %c0_22] : memref<128x256xf32, #tpu.memory_space<vmem>>, vector<8x256xf32>
    tpu.vector_store %arg11[%c72, %c0_22], %33 {strides = array<i32>} : memref<128x256xf32, #tpu.memory_space<vmem>>, vector<8x256xf32>,
    %35 = vector.extract_strided_slice %14 {offsets = [0, 2560], sizes = [8, 256], strides = [1, 1]} : vector<8x4096xf32> to vector<8x256xf32>
    %c80 = arith.constant 80 : index
    %c0_23 = arith.constant 0 : index
    %36 = vector.load %arg11[%c80, %c0_23] : memref<128x256xf32, #tpu.memory_space<vmem>>, vector<8x256xf32>
    tpu.vector_store %arg11[%c80, %c0_23], %35 {strides = array<i32>} : memref<128x256xf32, #tpu.memory_space<vmem>>, vector<8x256xf32>,
    %37 = vector.extract_strided_slice %14 {offsets = [0, 2816], sizes = [8, 256], strides = [1, 1]} : vector<8x4096xf32> to vector<8x256xf32>
    %c88 = arith.constant 88 : index
    %c0_24 = arith.constant 0 : index
    %38 = vector.load %arg11[%c88, %c0_24] : memref<128x256xf32, #tpu.memory_space<vmem>>, vector<8x256xf32>
    tpu.vector_store %arg11[%c88, %c0_24], %37 {strides = array<i32>} : memref<128x256xf32, #tpu.memory_space<vmem>>, vector<8x256xf32>,
    %39 = vector.extract_strided_slice %14 {offsets = [0, 3072], sizes = [8, 256], strides = [1, 1]} : vector<8x4096xf32> to vector<8x256xf32>
    %c96 = arith.constant 96 : index
    %c0_25 = arith.constant 0 : index
    %40 = vector.load %arg11[%c96, %c0_25] : memref<128x256xf32, #tpu.memory_space<vmem>>, vector<8x256xf32>
    tpu.vector_store %arg11[%c96, %c0_25], %39 {strides = array<i32>} : memref<128x256xf32, #tpu.memory_space<vmem>>, vector<8x256xf32>,
    %41 = vector.extract_strided_slice %14 {offsets = [0, 3328], sizes = [8, 256], strides = [1, 1]} : vector<8x4096xf32> to vector<8x256xf32>
    %c104 = arith.constant 104 : index
    %c0_26 = arith.constant 0 : index
    %42 = vector.load %arg11[%c104, %c0_26] : memref<128x256xf32, #tpu.memory_space<vmem>>, vector<8x256xf32>
    tpu.vector_store %arg11[%c104, %c0_26], %41 {strides = array<i32>} : memref<128x256xf32, #tpu.memory_space<vmem>>, vector<8x256xf32>,
    %43 = vector.extract_strided_slice %14 {offsets = [0, 3584], sizes = [8, 256], strides = [1, 1]} : vector<8x4096xf32> to vector<8x256xf32>
    %c112 = arith.constant 112 : index
    %c0_27 = arith.constant 0 : index
    %44 = vector.load %arg11[%c112, %c0_27] : memref<128x256xf32, #tpu.memory_space<vmem>>, vector<8x256xf32>
    tpu.vector_store %arg11[%c112, %c0_27], %43 {strides = array<i32>} : memref<128x256xf32, #tpu.memory_space<vmem>>, vector<8x256xf32>,
    %45 = vector.extract_strided_slice %14 {offsets = [0, 3840], sizes = [8, 256], strides = [1, 1]} : vector<8x4096xf32> to vector<8x256xf32>
    %c120 = arith.constant 120 : index
    %c0_28 = arith.constant 0 : index
    %46 = vector.load %arg11[%c120, %c0_28] : memref<128x256xf32, #tpu.memory_space<vmem>>, vector<8x256xf32>
    tpu.vector_store %arg11[%c120, %c0_28], %45 {strides = array<i32>} : memref<128x256xf32, #tpu.memory_space<vmem>>, vector<8x256xf32>,
    %c0_29 = arith.constant 0 : index
    %c0_30 = arith.constant 0 : index
    %47 = vector.load %arg11[%c0_29, %c0_30] : memref<128x256xf32, #tpu.memory_space<vmem>>, vector<128x256xf32>
    %c0_31 = arith.constant 0 : index
    %c0_32 = arith.constant 0 : index
    %48 = vector.load %arg6[%c0_31, %c0_32] : memref<192x128xf32, #tpu.memory_space<vmem>>, vector<192x128xf32>
    %cst_33 = arith.constant dense<0.000000e+00> : vector<192x256xf32>
    %49 = tpu.matmul %48, %47, %cst_33 {dimension_numbers = #tpu.dot_dimension_numbers<[1], [0], [0], [1], [0, 0, 1, 1], [], []>} : vector<192x128xf32>, vector<128x256xf32>, vector<192x256xf32> -> vector<192x256xf32>
    %50 = vector.extract_strided_slice %49 {offsets = [0, 0], sizes = [64, 256], strides = [1, 1]} : vector<192x256xf32> to vector<64x256xf32>
    %51 = vector.extract_strided_slice %49 {offsets = [64, 0], sizes = [64, 256], strides = [1, 1]} : vector<192x256xf32> to vector<64x256xf32>
    %52 = vector.extract_strided_slice %49 {offsets = [128, 0], sizes = [64, 256], strides = [1, 1]} : vector<192x256xf32> to vector<64x256xf32>
    %c0_34 = arith.constant 0 : index
    %c0_35 = arith.constant 0 : index
    %53 = vector.load %arg7[%c0_34, %c0_35] : memref<64x1xf32, #tpu.memory_space<vmem>>, vector<64x1xf32>
    %54 = vector.broadcast %53 : vector<64x1xf32> to vector<64x256xf32>
    %55 = arith.addf %51, %54 : vector<64x256xf32>
    %cst_36 = arith.constant 0.000000e+00 : f32
    %56 = vector.broadcast %cst_36 : f32 to vector<64x256xf32>
    %57 = arith.maximumf %55, %56 : vector<64x256xf32>
    %cst_37 = arith.constant 0.000000e+00 : f32
    %58 = vector.broadcast %cst_37 : f32 to vector<64x1xf32>
    %59 = vector.extract_strided_slice %50 {offsets = [0, 1], sizes = [64, 255], strides = [1, 1]} : vector<64x256xf32> to vector<64x255xf32>
    %60 = tpu.concatenate %59, %58 in 1 : vector<64x255xf32>, vector<64x1xf32> -> vector<64x256xf32>
    %61 = arith.addf %60, %52 : vector<64x256xf32>
    %62 = vector.broadcast %53 : vector<64x1xf32> to vector<64x256xf32>
    %63 = arith.addf %61, %62 : vector<64x256xf32>
    %cst_38 = arith.constant 0.000000e+00 : f32
    %64 = vector.broadcast %cst_38 : f32 to vector<64x256xf32>
    %65 = arith.maximumf %63, %64 : vector<64x256xf32>
    %cst_39 = arith.constant 0.000000e+00 : f32
    %66 = vector.broadcast %cst_39 : f32 to vector<64x1xf32>
    %67 = vector.extract_strided_slice %57 {offsets = [0, 1], sizes = [64, 255], strides = [1, 1]} : vector<64x256xf32> to vector<64x255xf32>
    %68 = tpu.concatenate %67, %66 in 1 : vector<64x255xf32>, vector<64x1xf32> -> vector<64x256xf32>
    %69 = tpu.concatenate %57, %65, %68 in 0 : vector<64x256xf32>, vector<64x256xf32>, vector<64x256xf32> -> vector<192x256xf32>
    %c0_40 = arith.constant 0 : index
    %c0_41 = arith.constant 0 : index
    %70 = vector.load %arg8[%c0_40, %c0_41] : memref<32x192xf32, #tpu.memory_space<vmem>>, vector<32x192xf32>
    %cst_42 = arith.constant dense<0.000000e+00> : vector<32x256xf32>
    %71 = tpu.matmul %70, %69, %cst_42 {dimension_numbers = #tpu.dot_dimension_numbers<[1], [0], [0], [1], [0, 0, 1, 1], [], []>} : vector<32x192xf32>, vector<192x256xf32>, vector<32x256xf32> -> vector<32x256xf32>
    %c0_43 = arith.constant 0 : index
    %c0_44 = arith.constant 0 : index
    %72 = vector.load %arg9[%c0_43, %c0_44] : memref<1x1xf32, #tpu.memory_space<vmem>>, vector<1x1xf32>
    %73 = vector.broadcast %72 : vector<1x1xf32> to vector<32x256xf32>
    %74 = arith.addf %71, %73 : vector<32x256xf32>
    %75 = math.tanh %74 : vector<32x256xf32>
    %76 = vector.extract_strided_slice %75 {offsets = [0, 0], sizes = [8, 256], strides = [1, 1]} : vector<32x256xf32> to vector<8x256xf32>
    %c0_45 = arith.constant 0 : index
    %c0_46 = arith.constant 0 : index
    %77 = vector.load %arg10[%c0_45, %c0_46] : memref<8x1024xf32, #tpu.memory_space<vmem>>, vector<8x256xf32>
    tpu.vector_store %arg10[%c0_45, %c0_46], %76 {strides = array<i32>} : memref<8x1024xf32, #tpu.memory_space<vmem>>, vector<8x256xf32>,
    %78 = vector.extract_strided_slice %75 {offsets = [8, 0], sizes = [8, 256], strides = [1, 1]} : vector<32x256xf32> to vector<8x256xf32>
    %c0_47 = arith.constant 0 : index
    %c256 = arith.constant 256 : index
    %79 = vector.load %arg10[%c0_47, %c256] : memref<8x1024xf32, #tpu.memory_space<vmem>>, vector<8x256xf32>
    tpu.vector_store %arg10[%c0_47, %c256], %78 {strides = array<i32>} : memref<8x1024xf32, #tpu.memory_space<vmem>>, vector<8x256xf32>,
    %80 = vector.extract_strided_slice %75 {offsets = [16, 0], sizes = [8, 256], strides = [1, 1]} : vector<32x256xf32> to vector<8x256xf32>
    %c0_48 = arith.constant 0 : index
    %c512 = arith.constant 512 : index
    %81 = vector.load %arg10[%c0_48, %c512] : memref<8x1024xf32, #tpu.memory_space<vmem>>, vector<8x256xf32>
    tpu.vector_store %arg10[%c0_48, %c512], %80 {strides = array<i32>} : memref<8x1024xf32, #tpu.memory_space<vmem>>, vector<8x256xf32>,
    %82 = vector.extract_strided_slice %75 {offsets = [24, 0], sizes = [8, 256], strides = [1, 1]} : vector<32x256xf32> to vector<8x256xf32>
    %c0_49 = arith.constant 0 : index
    %c768 = arith.constant 768 : index
    %83 = vector.load %arg10[%c0_49, %c768] : memref<8x1024xf32, #tpu.memory_space<vmem>>, vector<8x256xf32>
    tpu.vector_store %arg10[%c0_49, %c768], %82 {strides = array<i32>} : memref<8x1024xf32, #tpu.memory_space<vmem>>, vector<8x256xf32>,
    return
  }
  func.func @transform_0(%arg0: i32) -> (i32, i32) {
    %c0_i32 = arith.constant 0 : i32
    %c0_i32_0 = arith.constant 0 : i32
    return %arg0, %c0_i32 : i32, i32
  }
  func.func @transform_1(%arg0: i32) -> (i32, i32) {
    %c0_i32 = arith.constant 0 : i32
    %c0_i32_0 = arith.constant 0 : i32
    %c0_i32_1 = arith.constant 0 : i32
    return %c0_i32, %c0_i32_0 : i32, i32
  }
  func.func @transform_2(%arg0: i32) -> (i32, i32) {
    %c0_i32 = arith.constant 0 : i32
    %c0_i32_0 = arith.constant 0 : i32
    %c0_i32_1 = arith.constant 0 : i32
    return %c0_i32, %c0_i32_0 : i32, i32
  }
  func.func @transform_3(%arg0: i32) -> (i32, i32) {
    %c0_i32 = arith.constant 0 : i32
    %c0_i32_0 = arith.constant 0 : i32
    %c0_i32_1 = arith.constant 0 : i32
    return %c0_i32, %c0_i32_0 : i32, i32
  }
  func.func @transform_4(%arg0: i32) -> (i32, i32) {
    %c0_i32 = arith.constant 0 : i32
    %c0_i32_0 = arith.constant 0 : i32
    %c0_i32_1 = arith.constant 0 : i32
    return %c0_i32, %c0_i32_0 : i32, i32
  }
  func.func @transform_5(%arg0: i32) -> (i32, i32) {
    %c0_i32 = arith.constant 0 : i32
    %c0_i32_0 = arith.constant 0 : i32
    %c0_i32_1 = arith.constant 0 : i32
    return %c0_i32, %c0_i32_0 : i32, i32
  }
  func.func @transform_6(%arg0: i32) -> (i32, i32) {
    %c0_i32 = arith.constant 0 : i32
    %c0_i32_0 = arith.constant 0 : i32
    %c0_i32_1 = arith.constant 0 : i32
    return %c0_i32, %c0_i32_0 : i32, i32
  }
  func.func @transform_7(%arg0: i32) -> (i32, i32) {
    %c0_i32 = arith.constant 0 : i32
    %c0_i32_0 = arith.constant 0 : i32
    %c0_i32_1 = arith.constant 0 : i32
    return %c0_i32, %c0_i32_0 : i32, i32
  }
  func.func @transform_8(%arg0: i32) -> (i32, i32) {
    %c0_i32 = arith.constant 0 : i32
    %c0_i32_0 = arith.constant 0 : i32
    %c0_i32_1 = arith.constant 0 : i32
    return %c0_i32, %c0_i32_0 : i32, i32
  }
  func.func @transform_9(%arg0: i32) -> (i32, i32) {
    %c0_i32 = arith.constant 0 : i32
    %c0_i32_0 = arith.constant 0 : i32
    return %arg0, %c0_i32 : i32, i32
  }
}

</mosaic_0001>

<llo_original>
// kernel: tpu_custom_call.1
$region0: #{tpu_custom_call.1}
  #allocation0 [shape = 'u32[]', space=smem, size = 0x4, offset = 0x4, fixed_abs, tag = 'smem constant byte address 0x4 - core index']
  #allocation1 [shape = 'u32[72,128]{1,0:T(1,128)}', space=vmem, size = 0x9000, scoped, tag = 'internal scratch']
  #allocation2 [shape = 'f32[128,256]{1,0:T(8,128)}', space=vmem, size = 0x20000, scoped, tag = 'scratch operand']
  #allocation3 [shape = 'f32[1,1]{1,0:T(1,128)S(1)}', space=vmem, size = 0x200, scoped, tag = 'scoped memory for tpu_custom_call.1']
  %s0 = inlined_call_operand.hbm [shape: f32[8,8], index: 0, kind: input, shape index: {}]
  %s1 = inlined_call_operand.hbm [shape: f32[8,32], index: 1, kind: input, shape index: {}]
  %s2 = inlined_call_operand.vmem [shape: f32[1,32], index: 2, kind: input, shape index: {}]
  %s3 = inlined_call_operand.hbm [shape: f32[32,4096], index: 3, kind: input, shape index: {}]
  %s4 = inlined_call_operand.hbm [shape: f32[1,4096], index: 4, kind: input, shape index: {}]
  %s5 = inlined_call_operand.hbm [shape: f32[192,128], index: 5, kind: input, shape index: {}]
  %s6 = inlined_call_operand.vmem [shape: f32[64,1], index: 6, kind: input, shape index: {}]
  %s7 = inlined_call_operand.vmem [shape: f32[32,192], index: 7, kind: input, shape index: {}]
  %s8 = inlined_call_operand.<no memory space> [shape: f32[1,1], index: 8, kind: input, shape index: {}]
  %s9 = inlined_call_operand.hbm [shape: f32[8,1024], index: 9, kind: output, shape index: {}]
  %s10 = sld [smem:[#allocation0]]
  $region66: #{tpu_custom_call.1} parent=0
    _
  %s12 = ssub.s32 1, %s10
  %s13 = scalar_select 0, %s12, %s10
  %v14 = vstv %s8
  %15 = vst [vmem:[#allocation3] sm:$0x1] %v14
  $region1: #{tpu_custom_call.1} parent=0
    #allocation4 [shape = 'u8[4096]{0}', space=vmem, size = 0x1000, scoped, tag = 'input window, operand 0, single buffered']
    #allocation5 [shape = 's32[1]{0}', space=sflag, size = 0x4, scoped, tag = 'scoped memory for tpu_custom_call.1']
    #allocation6 [shape = 's32[1]{0}', space=sflag, size = 0x4, scoped, tag = 'scoped memory for tpu_custom_call.1']
    #allocation7 [shape = 'u8[4096]{0}', space=vmem, size = 0x1000, scoped, tag = 'input window, operand 1, single buffered']
    #allocation8 [shape = 's32[1]{0}', space=sflag, size = 0x4, scoped, tag = 'scoped memory for tpu_custom_call.1']
    #allocation9 [shape = 'u8[524288]{0}', space=vmem, size = 0x80000, scoped, tag = 'input window, operand 3, single buffered']
    #allocation10 [shape = 'u8[16384]{0}', space=vmem, size = 0x4000, scoped, tag = 'input window, operand 4, single buffered']
    #allocation11 [shape = 's32[1]{0}', space=sflag, size = 0x4, scoped, tag = 'scoped memory for tpu_custom_call.1']
    #allocation12 [shape = 'u8[98304]{0}', space=vmem, size = 0x18000, scoped, tag = 'input window, operand 5, single buffered']
    #allocation13 [shape = 'u8[32768]{0}', space=vmem, size = 0x8000, scoped, tag = 'output window, operand 0, single buffered']
    %16 = vsyncpa [#allocation5], 0
    %17 = vsyncpa [#allocation8], 0
    %18 = vsyncpa [#allocation11], 0
    %19 = vsyncpa [#allocation6], 0
    // Predicated region
    $region2: #{tpu_custom_call.1} parent=1 // pred_check
      _
    $region3: #{tpu_custom_call.1} parent=1 // pred_check_branch
      %21 = sbr.rel (0) target = $region5
    $region4: #{tpu_custom_call.1} parent=1 // pred_region
      %23 = vsyncadd [#allocation5], 0
      %s25 = sshll.u32 %s0, 4
      %s26 = int_to_ptr.hbm [resolvable:$true] %s25
      %s27 = sshll.u32 [#allocation4], 4
      %s28 = int_to_ptr.vmem [resolvable:$true] %s27
      %30 = dma.hbm_to_vmem [thread:$0]  %s26, 128, %s28, [#allocation5]
    $region5: #{tpu_custom_call.1} parent=1 // pred_fallthru
      _
    // Predicated region
    $region6: #{tpu_custom_call.1} parent=1 // pred_check
      _
    $region7: #{tpu_custom_call.1} parent=1 // pred_check_branch
      %32 = sbr.rel (0) target = $region9
    $region8: #{tpu_custom_call.1} parent=1 // pred_region
      %34 = vsyncadd [#allocation8], 0
      %s36 = sshll.u32 %s1, 4
      %s37 = int_to_ptr.hbm [resolvable:$true] %s36
      %s38 = sshll.u32 [#allocation7], 4
      %s39 = int_to_ptr.vmem [resolvable:$true] %s38
      %41 = dma.hbm_to_vmem [thread:$0]  %s37, 128, %s39, [#allocation8]
    $region9: #{tpu_custom_call.1} parent=1 // pred_fallthru
      _
    // Predicated region
    $region10: #{tpu_custom_call.1} parent=1 // pred_check
      _
    $region11: #{tpu_custom_call.1} parent=1 // pred_check_branch
      %43 = sbr.rel (0) target = $region13
    $region12: #{tpu_custom_call.1} parent=1 // pred_region
      _
    $region13: #{tpu_custom_call.1} parent=1 // pred_fallthru
      _
    // Predicated region
    $region14: #{tpu_custom_call.1} parent=1 // pred_check
      _
    $region15: #{tpu_custom_call.1} parent=1 // pred_check_branch
      %45 = sbr.rel (0) target = $region17
    $region16: #{tpu_custom_call.1} parent=1 // pred_region
      %47 = vsyncadd [#allocation8], 0
      %s48 = sshll.u32 %s3, 4
      %s49 = int_to_ptr.hbm [resolvable:$true] %s48
      %s50 = sshll.u32 [#allocation9], 4
      %s51 = int_to_ptr.vmem [resolvable:$true] %s50
      %56 = dma.hbm_to_vmem [thread:$0]  %s49, 16384, %s51, [#allocation8], 4096, 4096, 256
    $region17: #{tpu_custom_call.1} parent=1 // pred_fallthru
      _
    // Predicated region
    $region18: #{tpu_custom_call.1} parent=1 // pred_check
      _
    $region19: #{tpu_custom_call.1} parent=1 // pred_check_branch
      %58 = sbr.rel (0) target = $region21
    $region20: #{tpu_custom_call.1} parent=1 // pred_region
      %60 = vsyncadd [#allocation11], 0
      %s62 = sshll.u32 %s4, 4
      %s63 = int_to_ptr.hbm [resolvable:$true] %s62
      %s64 = sshll.u32 [#allocation10], 4
      %s65 = int_to_ptr.vmem [resolvable:$true] %s64
      %67 = dma.hbm_to_vmem [thread:$0]  %s63, 512, %s65, [#allocation11]
    $region21: #{tpu_custom_call.1} parent=1 // pred_fallthru
      _
    // Predicated region
    $region22: #{tpu_custom_call.1} parent=1 // pred_check
      _
    $region23: #{tpu_custom_call.1} parent=1 // pred_check_branch
      %69 = sbr.rel (0) target = $region25
    $region24: #{tpu_custom_call.1} parent=1 // pred_region
      %71 = vsyncadd [#allocation11], 0
      %s72 = sshll.u32 %s5, 4
      %s73 = int_to_ptr.hbm [resolvable:$true] %s72
      %s74 = sshll.u32 [#allocation12], 4
      %s75 = int_to_ptr.vmem [resolvable:$true] %s74
      %80 = dma.hbm_to_vmem [thread:$0]  %s73, 3072, %s75, [#allocation11], 128, 128, 8
    $region25: #{tpu_custom_call.1} parent=1 // pred_fallthru
      _
    // Predicated region
    $region26: #{tpu_custom_call.1} parent=1 // pred_check
      _
    $region27: #{tpu_custom_call.1} parent=1 // pred_check_branch
      %82 = sbr.rel (0) target = $region29
    $region28: #{tpu_custom_call.1} parent=1 // pred_region
      _
    $region29: #{tpu_custom_call.1} parent=1 // pred_fallthru
      _
    // Predicated region
    $region30: #{tpu_custom_call.1} parent=1 // pred_check
      _
    $region31: #{tpu_custom_call.1} parent=1 // pred_check_branch
      %84 = sbr.rel (0) target = $region33
    $region32: #{tpu_custom_call.1} parent=1 // pred_region
      _
    $region33: #{tpu_custom_call.1} parent=1 // pred_fallthru
      _
    // Predicated region
    $region34: #{tpu_custom_call.1} parent=1 // pred_check
      _
    $region35: #{tpu_custom_call.1} parent=1 // pred_check_branch
      %86 = sbr.rel (0) target = $region37
    $region36: #{tpu_custom_call.1} parent=1 // pred_region
      _
    $region37: #{tpu_custom_call.1} parent=1 // pred_fallthru
      _
    // Predicated region
    $region38: #{tpu_custom_call.1} parent=1 // pred_check
      _
    $region39: #{tpu_custom_call.1} parent=1 // pred_check_branch
      %88 = sbr.rel (0) target = $region41
    $region40: #{tpu_custom_call.1} parent=1 // pred_region
      %90 = dma.done [#allocation5], 128
    $region41: #{tpu_custom_call.1} parent=1 // pred_fallthru
      _
    // Predicated region
    $region42: #{tpu_custom_call.1} parent=1 // pred_check
      _
    $region43: #{tpu_custom_call.1} parent=1 // pred_check_branch
      %92 = sbr.rel (0) target = $region45
    $region44: #{tpu_custom_call.1} parent=1 // pred_region
      %94 = dma.done [#allocation8], 128
    $region45: #{tpu_custom_call.1} parent=1 // pred_fallthru
      _
    // Predicated region
    $region46: #{tpu_custom_call.1} parent=1 // pred_check
      _
    $region47: #{tpu_custom_call.1} parent=1 // pred_check_branch
      %96 = sbr.rel (0) target = $region49
    $region48: #{tpu_custom_call.1} parent=1 // pred_region
      %98 = dma.done [#allocation8], 16384
    $region49: #{tpu_custom_call.1} parent=1 // pred_fallthru
      _
    // Predicated region
    $region50: #{tpu_custom_call.1} parent=1 // pred_check
      _
    $region51: #{tpu_custom_call.1} parent=1 // pred_check_branch
      %100 = sbr.rel (0) target = $region53
    $region52: #{tpu_custom_call.1} parent=1 // pred_region
      %102 = dma.done [#allocation11], 512
    $region53: #{tpu_custom_call.1} parent=1 // pred_fallthru
      _
    // Predicated region
    $region54: #{tpu_custom_call.1} parent=1 // pred_check
      _
    $region55: #{tpu_custom_call.1} parent=1 // pred_check_branch
      %104 = sbr.rel (0) target = $region57
    $region56: #{tpu_custom_call.1} parent=1 // pred_region
      %106 = dma.done [#allocation11], 3072
    $region57: #{tpu_custom_call.1} parent=1 // pred_fallthru
      _
    %v107 = vld [vmem:[#allocation4] sm:$0xff]
    %v108 = vld [vmem:[#allocation7] sm:$0xff]
    %v109 = vld [vmem:[%s2] sm:$0x1]
    %v111 = vperm.slane %v109, 0
    %vm113 = vcmask 64512
    %v115 = vsel %vm113, %v107, 0
    %117 = vmatpush.msra.mxu0 0.0
    %118 = vmatpush.msra.mxu0 0.0
    %119 = vmatpush.msra.mxu0 0.0
    %120 = vmatpush.msra.mxu0 0.0
    %121 = vmatpush.msra.mxu0 0.0
    %122 = vmatpush.msra.mxu0 0.0
    %123 = vmatpush.msra.mxu0 0.0
    %124 = vmatpush.msra.mxu0 0.0
    %125 = vmatpush.msra.mxu0 0.0
    %126 = vmatpush.msra.mxu0 0.0
    %127 = vmatpush.msra.mxu0 0.0
    %128 = vmatpush.msra.mxu0 0.0
    %129 = vmatpush.msra.mxu0 0.0
    %130 = vmatpush.msra.mxu0 0.0
    %131 = vmatpush.msra.mxu0 0.0
    %132 = vmatpush.msra.mxu0 %v108
    %133 = vmatmul.f32.gmra.mxu0 %v115
    %v134 = vpop.f32.mrf.mxu0
    %v135 = vadd.f32 %v111, %v134
    %136 = vdwg.mxu0
    %v137 = vmax.f32 %v135, 0.0
    %v138 = vld [vmem:[#allocation9] sm:$0xff]
    %v139 = vld [vmem:[#allocation9 + $0x8] sm:$0xff]
    %v140 = vld [vmem:[#allocation9 + $0x10] sm:$0xff]
    %v141 = vld [vmem:[#allocation9 + $0x18] sm:$0xff]
    %v142 = vld [vmem:[#allocation9 + $0x20] sm:$0xff]
    %v143 = vld [vmem:[#allocation9 + $0x28] sm:$0xff]
    %v144 = vld [vmem:[#allocation9 + $0x30] sm:$0xff]
    %v145 = vld [vmem:[#allocation9 + $0x38] sm:$0xff]
    %v146 = vld [vmem:[#allocation9 + $0x40] sm:$0xff]
    %v147 = vld [vmem:[#allocation9 + $0x48] sm:$0xff]
    %v148 = vld [vmem:[#allocation9 + $0x50] sm:$0xff]
    %v149 = vld [vmem:[#allocation9 + $0x58] sm:$0xff]
    %v150 = vld [vmem:[#allocation9 + $0x60] sm:$0xff]
    %v151 = vld [vmem:[#allocation9 + $0x68] sm:$0xff]
    %v152 = vld [vmem:[#allocation9 + $0x70] sm:$0xff]
    %v153 = vld [vmem:[#allocation9 + $0x78] sm:$0xff]
    %v154 = vld [vmem:[#allocation9 + $0x80] sm:$0xff]
    %v155 = vld [vmem:[#allocation9 + $0x88] sm:$0xff]
    %v156 = vld [vmem:[#allocation9 + $0x90] sm:$0xff]
    %v157 = vld [vmem:[#allocation9 + $0x98] sm:$0xff]
    %v158 = vld [vmem:[#allocation9 + $0xa0] sm:$0xff]
    %v159 = vld [vmem:[#allocation9 + $0xa8] sm:$0xff]
    %v160 = vld [vmem:[#allocation9 + $0xb0] sm:$0xff]
    %v161 = vld [vmem:[#allocation9 + $0xb8] sm:$0xff]
    %v162 = vld [vmem:[#allocation9 + $0xc0] sm:$0xff]
    %v163 = vld [vmem:[#allocation9 + $0xc8] sm:$0xff]
    %v164 = vld [vmem:[#allocation9 + $0xd0] sm:$0xff]
    %v165 = vld [vmem:[#allocation9 + $0xd8] sm:$0xff]
    %v166 = vld [vmem:[#allocation9 + $0xe0] sm:$0xff]
    %v167 = vld [vmem:[#allocation9 + $0xe8] sm:$0xff]
    %v168 = vld [vmem:[#allocation9 + $0xf0] sm:$0xff]
    %v169 = vld [vmem:[#allocation9 + $0xf8] sm:$0xff]
    %v170 = vld [vmem:[#allocation9 + $0x100] sm:$0xff]
    %v171 = vld [vmem:[#allocation9 + $0x108] sm:$0xff]
    %v172 = vld [vmem:[#allocation9 + $0x110] sm:$0xff]
    %v173 = vld [vmem:[#allocation9 + $0x118] sm:$0xff]
    %v174 = vld [vmem:[#allocation9 + $0x120] sm:$0xff]
    %v175 = vld [vmem:[#allocation9 + $0x128] sm:$0xff]
    %v176 = vld [vmem:[#allocation9 + $0x130] sm:$0xff]
    %v177 = vld [vmem:[#allocation9 + $0x138] sm:$0xff]
    %v178 = vld [vmem:[#allocation9 + $0x140] sm:$0xff]
    %v179 = vld [vmem:[#allocation9 + $0x148] sm:$0xff]
    %v180 = vld [vmem:[#allocation9 + $0x150] sm:$0xff]
    %v181 = vld [vmem:[#allocation9 + $0x158] sm:$0xff]
    %v182 = vld [vmem:[#allocation9 + $0x160] sm:$0xff]
    %v183 = vld [vmem:[#allocation9 + $0x168] sm:$0xff]
    %v184 = vld [vmem:[#allocation9 + $0x170] sm:$0xff]
    %v185 = vld [vmem:[#allocation9 + $0x178] sm:$0xff]
    %v186 = vld [vmem:[#allocation9 + $0x180] sm:$0xff]
    %v187 = vld [vmem:[#allocation9 + $0x188] sm:$0xff]
    %v188 = vld [vmem:[#allocation9 + $0x190] sm:$0xff]
    %v189 = vld [vmem:[#allocation9 + $0x198] sm:$0xff]
    %v190 = vld [vmem:[#allocation9 + $0x1a0] sm:$0xff]
    %v191 = vld [vmem:[#allocation9 + $0x1a8] sm:$0xff]
    %v192 = vld [vmem:[#allocation9 + $0x1b0] sm:$0xff]
    %v193 = vld [vmem:[#allocation9 + $0x1b8] sm:$0xff]
    %v194 = vld [vmem:[#allocation9 + $0x1c0] sm:$0xff]
    %v195 = vld [vmem:[#allocation9 + $0x1c8] sm:$0xff]
    %v196 = vld [vmem:[#allocation9 + $0x1d0] sm:$0xff]
    %v197 = vld [vmem:[#allocation9 + $0x1d8] sm:$0xff]
    %v198 = vld [vmem:[#allocation9 + $0x1e0] sm:$0xff]
    %v199 = vld [vmem:[#allocation9 + $0x1e8] sm:$0xff]
    %v200 = vld [vmem:[#allocation9 + $0x1f0] sm:$0xff]
    %v201 = vld [vmem:[#allocation9 + $0x1f8] sm:$0xff]
    %v202 = vld [vmem:[#allocation9 + $0x200] sm:$0xff]
    %v203 = vld [vmem:[#allocation9 + $0x208] sm:$0xff]
    %v204 = vld [vmem:[#allocation9 + $0x210] sm:$0xff]
    %v205 = vld [vmem:[#allocation9 + $0x218] sm:$0xff]
    %v206 = vld [vmem:[#allocation9 + $0x220] sm:$0xff]
    %v207 = vld [vmem:[#allocation9 + $0x228] sm:$0xff]
    %v208 = vld [vmem:[#allocation9 + $0x230] sm:$0xff]
    %v209 = vld [vmem:[#allocation9 + $0x238] sm:$0xff]
    %v210 = vld [vmem:[#allocation9 + $0x240] sm:$0xff]
    %v211 = vld [vmem:[#allocation9 + $0x248] sm:$0xff]
    %v212 = vld [vmem:[#allocation9 + $0x250] sm:$0xff]
    %v213 = vld [vmem:[#allocation9 + $0x258] sm:$0xff]
    %v214 = vld [vmem:[#allocation9 + $0x260] sm:$0xff]
    %v215 = vld [vmem:[#allocation9 + $0x268] sm:$0xff]
    %v216 = vld [vmem:[#allocation9 + $0x270] sm:$0xff]
    %v217 = vld [vmem:[#allocation9 + $0x278] sm:$0xff]
    %v218 = vld [vmem:[#allocation9 + $0x280] sm:$0xff]
    %v219 = vld [vmem:[#allocation9 + $0x288] sm:$0xff]
    %v220 = vld [vmem:[#allocation9 + $0x290] sm:$0xff]
    %v221 = vld [vmem:[#allocation9 + $0x298] sm:$0xff]
    %v222 = vld [vmem:[#allocation9 + $0x2a0] sm:$0xff]
    %v223 = vld [vmem:[#allocation9 + $0x2a8] sm:$0xff]
    %v224 = vld [vmem:[#allocation9 + $0x2b0] sm:$0xff]
    %v225 = vld [vmem:[#allocation9 + $0x2b8] sm:$0xff]
    %v226 = vld [vmem:[#allocation9 + $0x2c0] sm:$0xff]
    %v227 = vld [vmem:[#allocation9 + $0x2c8] sm:$0xff]
    %v228 = vld [vmem:[#allocation9 + $0x2d0] sm:$0xff]
    %v229 = vld [vmem:[#allocation9 + $0x2d8] sm:$0xff]
    %v230 = vld [vmem:[#allocation9 + $0x2e0] sm:$0xff]
    %v231 = vld [vmem:[#allocation9 + $0x2e8] sm:$0xff]
    %v232 = vld [vmem:[#allocation9 + $0x2f0] sm:$0xff]
    %v233 = vld [vmem:[#allocation9 + $0x2f8] sm:$0xff]
    %v234 = vld [vmem:[#allocation9 + $0x300] sm:$0xff]
    %v235 = vld [vmem:[#allocation9 + $0x308] sm:$0xff]
    %v236 = vld [vmem:[#allocation9 + $0x310] sm:$0xff]
    %v237 = vld [vmem:[#allocation9 + $0x318] sm:$0xff]
    %v238 = vld [vmem:[#allocation9 + $0x320] sm:$0xff]
    %v239 = vld [vmem:[#allocation9 + $0x328] sm:$0xff]
    %v240 = vld [vmem:[#allocation9 + $0x330] sm:$0xff]
    %v241 = vld [vmem:[#allocation9 + $0x338] sm:$0xff]
    %v242 = vld [vmem:[#allocation9 + $0x340] sm:$0xff]
    %v243 = vld [vmem:[#allocation9 + $0x348] sm:$0xff]
    %v244 = vld [vmem:[#allocation9 + $0x350] sm:$0xff]
    %v245 = vld [vmem:[#allocation9 + $0x358] sm:$0xff]
    %v246 = vld [vmem:[#allocation9 + $0x360] sm:$0xff]
    %v247 = vld [vmem:[#allocation9 + $0x368] sm:$0xff]
    %v248 = vld [vmem:[#allocation9 + $0x370] sm:$0xff]
    %v249 = vld [vmem:[#allocation9 + $0x378] sm:$0xff]
    %v250 = vld [vmem:[#allocation9 + $0x380] sm:$0xff]
    %v251 = vld [vmem:[#allocation9 + $0x388] sm:$0xff]
    %v252 = vld [vmem:[#allocation9 + $0x390] sm:$0xff]
    %v253 = vld [vmem:[#allocation9 + $0x398] sm:$0xff]
    %v254 = vld [vmem:[#allocation9 + $0x3a0] sm:$0xff]
    %v255 = vld [vmem:[#allocation9 + $0x3a8] sm:$0xff]
    %v256 = vld [vmem:[#allocation9 + $0x3b0] sm:$0xff]
    %v257 = vld [vmem:[#allocation9 + $0x3b8] sm:$0xff]
    %v258 = vld [vmem:[#allocation9 + $0x3c0] sm:$0xff]
    %v259 = vld [vmem:[#allocation9 + $0x3c8] sm:$0xff]
    %v260 = vld [vmem:[#allocation9 + $0x3d0] sm:$0xff]
    %v261 = vld [vmem:[#allocation9 + $0x3d8] sm:$0xff]
    %v262 = vld [vmem:[#allocation9 + $0x3e0] sm:$0xff]
    %v263 = vld [vmem:[#allocation9 + $0x3e8] sm:$0xff]
    %v264 = vld [vmem:[#allocation9 + $0x3f0] sm:$0xff]
    %v265 = vld [vmem:[#allocation9 + $0x3f8] sm:$0xff]
    %v266 = vld [vmem:[#allocation10] sm:$0xff]
    %v267 = vld [vmem:[#allocation10 + $0x8] sm:$0xff]
    %v268 = vld [vmem:[#allocation10 + $0x10] sm:$0xff]
    %v269 = vld [vmem:[#allocation10 + $0x18] sm:$0xff]
    %v274 = vperm.slane %v266, 0
    %v275 = vperm.slane %v266, 1
    %v276 = vperm.slane %v266, 2
    %v277 = vperm.slane %v266, 3
    %v278 = vperm.slane %v266, 4
    %v279 = vperm.slane %v266, 5
    %v280 = vperm.slane %v266, 6
    %v281 = vperm.slane %v266, 7
    %v282 = vperm.slane %v267, 0
    %v283 = vperm.slane %v267, 1
    %v284 = vperm.slane %v267, 2
    %v285 = vperm.slane %v267, 3
    %v286 = vperm.slane %v267, 4
    %v287 = vperm.slane %v267, 5
    %v288 = vperm.slane %v267, 6
    %v289 = vperm.slane %v267, 7
    %v290 = vperm.slane %v268, 0
    %v291 = vperm.slane %v268, 1
    %v292 = vperm.slane %v268, 2
    %v293 = vperm.slane %v268, 3
    %v294 = vperm.slane %v268, 4
    %v295 = vperm.slane %v268, 5
    %v296 = vperm.slane %v268, 6
    %v297 = vperm.slane %v268, 7
    %v298 = vperm.slane %v269, 0
    %v299 = vperm.slane %v269, 1
    %v300 = vperm.slane %v269, 2
    %v301 = vperm.slane %v269, 3
    %v302 = vperm.slane %v269, 4
    %v303 = vperm.slane %v269, 5
    %v304 = vperm.slane %v269, 6
    %v305 = vperm.slane %v269, 7
    %vm338 = vcmask 261120
    %v340 = vsel %vm338, %v137, 0
    %342 = vmatpush.msra.mxu0 0.0
    %343 = vmatpush.msra.mxu0 0.0
    %344 = vmatpush.msra.mxu0 0.0
    %345 = vmatpush.msra.mxu0 0.0
    %346 = vmatpush.msra.mxu0 0.0
    %347 = vmatpush.msra.mxu0 0.0
    %348 = vmatpush.msra.mxu0 0.0
    %349 = vmatpush.msra.mxu0 0.0
    %350 = vmatpush.msra.mxu0 0.0
    %351 = vmatpush.msra.mxu0 0.0
    %352 = vmatpush.msra.mxu0 0.0
    %353 = vmatpush.msra.mxu0 0.0
    %354 = vmatpush.msra.mxu0 %v234
    %355 = vmatpush.msra.mxu0 %v202
    %356 = vmatpush.msra.mxu0 %v170
    %357 = vmatpush.msra.mxu0 %v138
    %358 = vmatmul.f32.gmra.mxu0 %v340
    %v359 = vpop.f32.mrf.mxu0
    %v360 = vadd.f32 %v274, %v359
    %361 = vdwg.mxu0
    %362 = vmatpush.msra.mxu0 0.0
    %363 = vmatpush.msra.mxu0 0.0
    %364 = vmatpush.msra.mxu0 0.0
    %365 = vmatpush.msra.mxu0 0.0
    %366 = vmatpush.msra.mxu0 0.0
    %367 = vmatpush.msra.mxu0 0.0
    %368 = vmatpush.msra.mxu0 0.0
    %369 = vmatpush.msra.mxu0 0.0
    %370 = vmatpush.msra.mxu0 0.0
    %371 = vmatpush.msra.mxu0 0.0
    %372 = vmatpush.msra.mxu0 0.0
    %373 = vmatpush.msra.mxu0 0.0
    %374 = vmatpush.msra.mxu0 %v235
    %375 = vmatpush.msra.mxu0 %v203
    %376 = vmatpush.msra.mxu0 %v171
    %377 = vmatpush.msra.mxu0 %v139
    %378 = vmatmul.f32.gmra.mxu0 %v340
    %v379 = vpop.f32.mrf.mxu0
    %v380 = vadd.f32 %v275, %v379
    %381 = vdwg.mxu0
    %382 = vmatpush.msra.mxu0 0.0
    %383 = vmatpush.msra.mxu0 0.0
    %384 = vmatpush.msra.mxu0 0.0
    %385 = vmatpush.msra.mxu0 0.0
    %386 = vmatpush.msra.mxu0 0.0
    %387 = vmatpush.msra.mxu0 0.0
    %388 = vmatpush.msra.mxu0 0.0
    %389 = vmatpush.msra.mxu0 0.0
    %390 = vmatpush.msra.mxu0 0.0
    %391 = vmatpush.msra.mxu0 0.0
    %392 = vmatpush.msra.mxu0 0.0
    %393 = vmatpush.msra.mxu0 0.0
    %394 = vmatpush.msra.mxu0 %v236
    %395 = vmatpush.msra.mxu0 %v204
    %396 = vmatpush.msra.mxu0 %v172
    %397 = vmatpush.msra.mxu0 %v140
    %398 = vmatmul.f32.gmra.mxu0 %v340
    %v399 = vpop.f32.mrf.mxu0
    %v400 = vadd.f32 %v276, %v399
    %401 = vdwg.mxu0
    %402 = vmatpush.msra.mxu0 0.0
    %403 = vmatpush.msra.mxu0 0.0
    %404 = vmatpush.msra.mxu0 0.0
    %405 = vmatpush.msra.mxu0 0.0
    %406 = vmatpush.msra.mxu0 0.0
    %407 = vmatpush.msra.mxu0 0.0
    %408 = vmatpush.msra.mxu0 0.0
    %409 = vmatpush.msra.mxu0 0.0
    %410 = vmatpush.msra.mxu0 0.0
    %411 = vmatpush.msra.mxu0 0.0
    %412 = vmatpush.msra.mxu0 0.0
    %413 = vmatpush.msra.mxu0 0.0
    %414 = vmatpush.msra.mxu0 %v237
    %415 = vmatpush.msra.mxu0 %v205
    %416 = vmatpush.msra.mxu0 %v173
    %417 = vmatpush.msra.mxu0 %v141
    %418 = vmatmul.f32.gmra.mxu0 %v340
    %v419 = vpop.f32.mrf.mxu0
    %v420 = vadd.f32 %v277, %v419
    %421 = vdwg.mxu0
    %422 = vmatpush.msra.mxu0 0.0
    %423 = vmatpush.msra.mxu0 0.0
    %424 = vmatpush.msra.mxu0 0.0
    %425 = vmatpush.msra.mxu0 0.0
    %426 = vmatpush.msra.mxu0 0.0
    %427 = vmatpush.msra.mxu0 0.0
    %428 = vmatpush.msra.mxu0 0.0
    %429 = vmatpush.msra.mxu0 0.0
    %430 = vmatpush.msra.mxu0 0.0
    %431 = vmatpush.msra.mxu0 0.0
    %432 = vmatpush.msra.mxu0 0.0
    %433 = vmatpush.msra.mxu0 0.0
    %434 = vmatpush.msra.mxu0 %v238
    %435 = vmatpush.msra.mxu0 %v206
    %436 = vmatpush.msra.mxu0 %v174
    %437 = vmatpush.msra.mxu0 %v142
    %438 = vmatmul.f32.gmra.mxu0 %v340
    %v439 = vpop.f32.mrf.mxu0
    %v440 = vadd.f32 %v278, %v439
    %441 = vdwg.mxu0
    %442 = vmatpush.msra.mxu0 0.0
    %443 = vmatpush.msra.mxu0 0.0
    %444 = vmatpush.msra.mxu0 0.0
    %445 = vmatpush.msra.mxu0 0.0
    %446 = vmatpush.msra.mxu0 0.0
    %447 = vmatpush.msra.mxu0 0.0
    %448 = vmatpush.msra.mxu0 0.0
    %449 = vmatpush.msra.mxu0 0.0
    %450 = vmatpush.msra.mxu0 0.0
    %451 = vmatpush.msra.mxu0 0.0
    %452 = vmatpush.msra.mxu0 0.0
    %453 = vmatpush.msra.mxu0 0.0
    %454 = vmatpush.msra.mxu0 %v239
    %455 = vmatpush.msra.mxu0 %v207
    %456 = vmatpush.msra.mxu0 %v175
    %457 = vmatpush.msra.mxu0 %v143
    %458 = vmatmul.f32.gmra.mxu0 %v340
    %v459 = vpop.f32.mrf.mxu0
    %v460 = vadd.f32 %v279, %v459
    %461 = vdwg.mxu0
    %462 = vmatpush.msra.mxu0 0.0
    %463 = vmatpush.msra.mxu0 0.0
    %464 = vmatpush.msra.mxu0 0.0
    %465 = vmatpush.msra.mxu0 0.0
    %466 = vmatpush.msra.mxu0 0.0
    %467 = vmatpush.msra.mxu0 0.0
    %468 = vmatpush.msra.mxu0 0.0
    %469 = vmatpush.msra.mxu0 0.0
    %470 = vmatpush.msra.mxu0 0.0
    %471 = vmatpush.msra.mxu0 0.0
    %472 = vmatpush.msra.mxu0 0.0
    %473 = vmatpush.msra.mxu0 0.0
    %474 = vmatpush.msra.mxu0 %v240
    %475 = vmatpush.msra.mxu0 %v208
    %476 = vmatpush.msra.mxu0 %v176
    %477 = vmatpush.msra.mxu0 %v144
    %478 = vmatmul.f32.gmra.mxu0 %v340
    %v479 = vpop.f32.mrf.mxu0
    %v480 = vadd.f32 %v280, %v479
    %481 = vdwg.mxu0
    %482 = vmatpush.msra.mxu0 0.0
    %483 = vmatpush.msra.mxu0 0.0
    %484 = vmatpush.msra.mxu0 0.0
    %485 = vmatpush.msra.mxu0 0.0
    %486 = vmatpush.msra.mxu0 0.0
    %487 = vmatpush.msra.mxu0 0.0
    %488 = vmatpush.msra.mxu0 0.0
    %489 = vmatpush.msra.mxu0 0.0
    %490 = vmatpush.msra.mxu0 0.0
    %491 = vmatpush.msra.mxu0 0.0
    %492 = vmatpush.msra.mxu0 0.0
    %493 = vmatpush.msra.mxu0 0.0
    %494 = vmatpush.msra.mxu0 %v241
    %495 = vmatpush.msra.mxu0 %v209
    %496 = vmatpush.msra.mxu0 %v177
    %497 = vmatpush.msra.mxu0 %v145
    %498 = vmatmul.f32.gmra.mxu0 %v340
    %v499 = vpop.f32.mrf.mxu0
    %v500 = vadd.f32 %v281, %v499
    %501 = vdwg.mxu0
    %502 = vmatpush.msra.mxu0 0.0
    %503 = vmatpush.msra.mxu0 0.0
    %504 = vmatpush.msra.mxu0 0.0
    %505 = vmatpush.msra.mxu0 0.0
    %506 = vmatpush.msra.mxu0 0.0
    %507 = vmatpush.msra.mxu0 0.0
    %508 = vmatpush.msra.mxu0 0.0
    %509 = vmatpush.msra.mxu0 0.0
    %510 = vmatpush.msra.mxu0 0.0
    %511 = vmatpush.msra.mxu0 0.0
    %512 = vmatpush.msra.mxu0 0.0
    %513 = vmatpush.msra.mxu0 0.0
    %514 = vmatpush.msra.mxu0 %v242
    %515 = vmatpush.msra.mxu0 %v210
    %516 = vmatpush.msra.mxu0 %v178
    %517 = vmatpush.msra.mxu0 %v146
    %518 = vmatmul.f32.gmra.mxu0 %v340
    %v519 = vpop.f32.mrf.mxu0
    %v520 = vadd.f32 %v282, %v519
    %521 = vdwg.mxu0
    %522 = vmatpush.msra.mxu0 0.0
    %523 = vmatpush.msra.mxu0 0.0
    %524 = vmatpush.msra.mxu0 0.0
    %525 = vmatpush.msra.mxu0 0.0
    %526 = vmatpush.msra.mxu0 0.0
    %527 = vmatpush.msra.mxu0 0.0
    %528 = vmatpush.msra.mxu0 0.0
    %529 = vmatpush.msra.mxu0 0.0
    %530 = vmatpush.msra.mxu0 0.0
    %531 = vmatpush.msra.mxu0 0.0
    %532 = vmatpush.msra.mxu0 0.0
    %533 = vmatpush.msra.mxu0 0.0
    %534 = vmatpush.msra.mxu0 %v243
    %535 = vmatpush.msra.mxu0 %v211
    %536 = vmatpush.msra.mxu0 %v179
    %537 = vmatpush.msra.mxu0 %v147
    %538 = vmatmul.f32.gmra.mxu0 %v340
    %v539 = vpop.f32.mrf.mxu0
    %v540 = vadd.f32 %v283, %v539
    %541 = vdwg.mxu0
    %542 = vmatpush.msra.mxu0 0.0
    %543 = vmatpush.msra.mxu0 0.0
    %544 = vmatpush.msra.mxu0 0.0
    %545 = vmatpush.msra.mxu0 0.0
    %546 = vmatpush.msra.mxu0 0.0
    %547 = vmatpush.msra.mxu0 0.0
    %548 = vmatpush.msra.mxu0 0.0
    %549 = vmatpush.msra.mxu0 0.0
    %550 = vmatpush.msra.mxu0 0.0
    %551 = vmatpush.msra.mxu0 0.0
    %552 = vmatpush.msra.mxu0 0.0
    %553 = vmatpush.msra.mxu0 0.0
    %554 = vmatpush.msra.mxu0 %v244
    %555 = vmatpush.msra.mxu0 %v212
    %556 = vmatpush.msra.mxu0 %v180
    %557 = vmatpush.msra.mxu0 %v148
    %558 = vmatmul.f32.gmra.mxu0 %v340
    %v559 = vpop.f32.mrf.mxu0
    %v560 = vadd.f32 %v284, %v559
    %561 = vdwg.mxu0
    %562 = vmatpush.msra.mxu0 0.0
    %563 = vmatpush.msra.mxu0 0.0
    %564 = vmatpush.msra.mxu0 0.0
    %565 = vmatpush.msra.mxu0 0.0
    %566 = vmatpush.msra.mxu0 0.0
    %567 = vmatpush.msra.mxu0 0.0
    %568 = vmatpush.msra.mxu0 0.0
    %569 = vmatpush.msra.mxu0 0.0
    %570 = vmatpush.msra.mxu0 0.0
    %571 = vmatpush.msra.mxu0 0.0
    %572 = vmatpush.msra.mxu0 0.0
    %573 = vmatpush.msra.mxu0 0.0
    %574 = vmatpush.msra.mxu0 %v245
    %575 = vmatpush.msra.mxu0 %v213
    %576 = vmatpush.msra.mxu0 %v181
    %577 = vmatpush.msra.mxu0 %v149
    %578 = vmatmul.f32.gmra.mxu0 %v340
    %v579 = vpop.f32.mrf.mxu0
    %v580 = vadd.f32 %v285, %v579
    %581 = vdwg.mxu0
    %582 = vmatpush.msra.mxu0 0.0
    %583 = vmatpush.msra.mxu0 0.0
    %584 = vmatpush.msra.mxu0 0.0
    %585 = vmatpush.msra.mxu0 0.0
    %586 = vmatpush.msra.mxu0 0.0
    %587 = vmatpush.msra.mxu0 0.0
    %588 = vmatpush.msra.mxu0 0.0
    %589 = vmatpush.msra.mxu0 0.0
    %590 = vmatpush.msra.mxu0 0.0
    %591 = vmatpush.msra.mxu0 0.0
    %592 = vmatpush.msra.mxu0 0.0
    %593 = vmatpush.msra.mxu0 0.0
    %594 = vmatpush.msra.mxu0 %v246
    %595 = vmatpush.msra.mxu0 %v214
    %596 = vmatpush.msra.mxu0 %v182
    %597 = vmatpush.msra.mxu0 %v150
    %598 = vmatmul.f32.gmra.mxu0 %v340
    %v599 = vpop.f32.mrf.mxu0
    %v600 = vadd.f32 %v286, %v599
    %601 = vdwg.mxu0
    %602 = vmatpush.msra.mxu0 0.0
    %603 = vmatpush.msra.mxu0 0.0
    %604 = vmatpush.msra.mxu0 0.0
    %605 = vmatpush.msra.mxu0 0.0
    %606 = vmatpush.msra.mxu0 0.0
    %607 = vmatpush.msra.mxu0 0.0
    %608 = vmatpush.msra.mxu0 0.0
    %609 = vmatpush.msra.mxu0 0.0
    %610 = vmatpush.msra.mxu0 0.0
    %611 = vmatpush.msra.mxu0 0.0
    %612 = vmatpush.msra.mxu0 0.0
    %613 = vmatpush.msra.mxu0 0.0
    %614 = vmatpush.msra.mxu0 %v247
    %615 = vmatpush.msra.mxu0 %v215
    %616 = vmatpush.msra.mxu0 %v183
    %617 = vmatpush.msra.mxu0 %v151
    %618 = vmatmul.f32.gmra.mxu0 %v340
    %v619 = vpop.f32.mrf.mxu0
    %v620 = vadd.f32 %v287, %v619
    %621 = vdwg.mxu0
    %622 = vmatpush.msra.mxu0 0.0
    %623 = vmatpush.msra.mxu0 0.0
    %624 = vmatpush.msra.mxu0 0.0
    %625 = vmatpush.msra.mxu0 0.0
    %626 = vmatpush.msra.mxu0 0.0
    %627 = vmatpush.msra.mxu0 0.0
    %628 = vmatpush.msra.mxu0 0.0
    %629 = vmatpush.msra.mxu0 0.0
    %630 = vmatpush.msra.mxu0 0.0
    %631 = vmatpush.msra.mxu0 0.0
    %632 = vmatpush.msra.mxu0 0.0
    %633 = vmatpush.msra.mxu0 0.0
    %634 = vmatpush.msra.mxu0 %v248
    %635 = vmatpush.msra.mxu0 %v216
    %636 = vmatpush.msra.mxu0 %v184
    %637 = vmatpush.msra.mxu0 %v152
    %638 = vmatmul.f32.gmra.mxu0 %v340
    %v639 = vpop.f32.mrf.mxu0
    %v640 = vadd.f32 %v288, %v639
    %641 = vdwg.mxu0
    %642 = vmatpush.msra.mxu0 0.0
    %643 = vmatpush.msra.mxu0 0.0
    %644 = vmatpush.msra.mxu0 0.0
    %645 = vmatpush.msra.mxu0 0.0
    %646 = vmatpush.msra.mxu0 0.0
    %647 = vmatpush.msra.mxu0 0.0
    %648 = vmatpush.msra.mxu0 0.0
    %649 = vmatpush.msra.mxu0 0.0
    %650 = vmatpush.msra.mxu0 0.0
    %651 = vmatpush.msra.mxu0 0.0
    %652 = vmatpush.msra.mxu0 0.0
    %653 = vmatpush.msra.mxu0 0.0
    %654 = vmatpush.msra.mxu0 %v249
    %655 = vmatpush.msra.mxu0 %v217
    %656 = vmatpush.msra.mxu0 %v185
    %657 = vmatpush.msra.mxu0 %v153
    %658 = vmatmul.f32.gmra.mxu0 %v340
    %v659 = vpop.f32.mrf.mxu0
    %v660 = vadd.f32 %v289, %v659
    %661 = vdwg.mxu0
    %662 = vmatpush.msra.mxu0 0.0
    %663 = vmatpush.msra.mxu0 0.0
    %664 = vmatpush.msra.mxu0 0.0
    %665 = vmatpush.msra.mxu0 0.0
    %666 = vmatpush.msra.mxu0 0.0
    %667 = vmatpush.msra.mxu0 0.0
    %668 = vmatpush.msra.mxu0 0.0
    %669 = vmatpush.msra.mxu0 0.0
    %670 = vmatpush.msra.mxu0 0.0
    %671 = vmatpush.msra.mxu0 0.0
    %672 = vmatpush.msra.mxu0 0.0
    %673 = vmatpush.msra.mxu0 0.0
    %674 = vmatpush.msra.mxu0 %v250
    %675 = vmatpush.msra.mxu0 %v218
    %676 = vmatpush.msra.mxu0 %v186
    %677 = vmatpush.msra.mxu0 %v154
    %678 = vmatmul.f32.gmra.mxu0 %v340
    %v679 = vpop.f32.mrf.mxu0
    %v680 = vadd.f32 %v290, %v679
    %681 = vdwg.mxu0
    %682 = vmatpush.msra.mxu0 0.0
    %683 = vmatpush.msra.mxu0 0.0
    %684 = vmatpush.msra.mxu0 0.0
    %685 = vmatpush.msra.mxu0 0.0
    %686 = vmatpush.msra.mxu0 0.0
    %687 = vmatpush.msra.mxu0 0.0
    %688 = vmatpush.msra.mxu0 0.0
    %689 = vmatpush.msra.mxu0 0.0
    %690 = vmatpush.msra.mxu0 0.0
    %691 = vmatpush.msra.mxu0 0.0
    %692 = vmatpush.msra.mxu0 0.0
    %693 = vmatpush.msra.mxu0 0.0
    %694 = vmatpush.msra.mxu0 %v251
    %695 = vmatpush.msra.mxu0 %v219
    %696 = vmatpush.msra.mxu0 %v187
    %697 = vmatpush.msra.mxu0 %v155
    %698 = vmatmul.f32.gmra.mxu0 %v340
    %v699 = vpop.f32.mrf.mxu0
    %v700 = vadd.f32 %v291, %v699
    %701 = vdwg.mxu0
    %702 = vmatpush.msra.mxu0 0.0
    %703 = vmatpush.msra.mxu0 0.0
    %704 = vmatpush.msra.mxu0 0.0
    %705 = vmatpush.msra.mxu0 0.0
    %706 = vmatpush.msra.mxu0 0.0
    %707 = vmatpush.msra.mxu0 0.0
    %708 = vmatpush.msra.mxu0 0.0
    %709 = vmatpush.msra.mxu0 0.0
    %710 = vmatpush.msra.mxu0 0.0
    %711 = vmatpush.msra.mxu0 0.0
    %712 = vmatpush.msra.mxu0 0.0
    %713 = vmatpush.msra.mxu0 0.0
    %714 = vmatpush.msra.mxu0 %v252
    %715 = vmatpush.msra.mxu0 %v220
    %716 = vmatpush.msra.mxu0 %v188
    %717 = vmatpush.msra.mxu0 %v156
    %718 = vmatmul.f32.gmra.mxu0 %v340
    %v719 = vpop.f32.mrf.mxu0
    %v720 = vadd.f32 %v292, %v719
    %721 = vdwg.mxu0
    %722 = vmatpush.msra.mxu0 0.0
    %723 = vmatpush.msra.mxu0 0.0
    %724 = vmatpush.msra.mxu0 0.0
    %725 = vmatpush.msra.mxu0 0.0
    %726 = vmatpush.msra.mxu0 0.0
    %727 = vmatpush.msra.mxu0 0.0
    %728 = vmatpush.msra.mxu0 0.0
    %729 = vmatpush.msra.mxu0 0.0
    %730 = vmatpush.msra.mxu0 0.0
    %731 = vmatpush.msra.mxu0 0.0
    %732 = vmatpush.msra.mxu0 0.0
    %733 = vmatpush.msra.mxu0 0.0
    %734 = vmatpush.msra.mxu0 %v253
    %735 = vmatpush.msra.mxu0 %v221
    %736 = vmatpush.msra.mxu0 %v189
    %737 = vmatpush.msra.mxu0 %v157
    %738 = vmatmul.f32.gmra.mxu0 %v340
    %v739 = vpop.f32.mrf.mxu0
    %v740 = vadd.f32 %v293, %v739
    %741 = vdwg.mxu0
    %742 = vmatpush.msra.mxu0 0.0
    %743 = vmatpush.msra.mxu0 0.0
    %744 = vmatpush.msra.mxu0 0.0
    %745 = vmatpush.msra.mxu0 0.0
    %746 = vmatpush.msra.mxu0 0.0
    %747 = vmatpush.msra.mxu0 0.0
    %748 = vmatpush.msra.mxu0 0.0
    %749 = vmatpush.msra.mxu0 0.0
    %750 = vmatpush.msra.mxu0 0.0
    %751 = vmatpush.msra.mxu0 0.0
    %752 = vmatpush.msra.mxu0 0.0
    %753 = vmatpush.msra.mxu0 0.0
    %754 = vmatpush.msra.mxu0 %v254
    %755 = vmatpush.msra.mxu0 %v222
    %756 = vmatpush.msra.mxu0 %v190
    %757 = vmatpush.msra.mxu0 %v158
    %758 = vmatmul.f32.gmra.mxu0 %v340
    %v759 = vpop.f32.mrf.mxu0
    %v760 = vadd.f32 %v294, %v759
    %761 = vdwg.mxu0
    %762 = vmatpush.msra.mxu0 0.0
    %763 = vmatpush.msra.mxu0 0.0
    %764 = vmatpush.msra.mxu0 0.0
    %765 = vmatpush.msra.mxu0 0.0
    %766 = vmatpush.msra.mxu0 0.0
    %767 = vmatpush.msra.mxu0 0.0
    %768 = vmatpush.msra.mxu0 0.0
    %769 = vmatpush.msra.mxu0 0.0
    %770 = vmatpush.msra.mxu0 0.0
    %771 = vmatpush.msra.mxu0 0.0
    %772 = vmatpush.msra.mxu0 0.0
    %773 = vmatpush.msra.mxu0 0.0
    %774 = vmatpush.msra.mxu0 %v255
    %775 = vmatpush.msra.mxu0 %v223
    %776 = vmatpush.msra.mxu0 %v191
    %777 = vmatpush.msra.mxu0 %v159
    %778 = vmatmul.f32.gmra.mxu0 %v340
    %v779 = vpop.f32.mrf.mxu0
    %v780 = vadd.f32 %v295, %v779
    %781 = vdwg.mxu0
    %782 = vmatpush.msra.mxu0 0.0
    %783 = vmatpush.msra.mxu0 0.0
    %784 = vmatpush.msra.mxu0 0.0
    %785 = vmatpush.msra.mxu0 0.0
    %786 = vmatpush.msra.mxu0 0.0
    %787 = vmatpush.msra.mxu0 0.0
    %788 = vmatpush.msra.mxu0 0.0
    %789 = vmatpush.msra.mxu0 0.0
    %790 = vmatpush.msra.mxu0 0.0
    %791 = vmatpush.msra.mxu0 0.0
    %792 = vmatpush.msra.mxu0 0.0
    %793 = vmatpush.msra.mxu0 0.0
    %794 = vmatpush.msra.mxu0 %v256
    %795 = vmatpush.msra.mxu0 %v224
    %796 = vmatpush.msra.mxu0 %v192
    %797 = vmatpush.msra.mxu0 %v160
    %798 = vmatmul.f32.gmra.mxu0 %v340
    %v799 = vpop.f32.mrf.mxu0
    %v800 = vadd.f32 %v296, %v799
    %801 = vdwg.mxu0
    %802 = vmatpush.msra.mxu0 0.0
    %803 = vmatpush.msra.mxu0 0.0
    %804 = vmatpush.msra.mxu0 0.0
    %805 = vmatpush.msra.mxu0 0.0
    %806 = vmatpush.msra.mxu0 0.0
    %807 = vmatpush.msra.mxu0 0.0
    %808 = vmatpush.msra.mxu0 0.0
    %809 = vmatpush.msra.mxu0 0.0
    %810 = vmatpush.msra.mxu0 0.0
    %811 = vmatpush.msra.mxu0 0.0
    %812 = vmatpush.msra.mxu0 0.0
    %813 = vmatpush.msra.mxu0 0.0
    %814 = vmatpush.msra.mxu0 %v257
    %815 = vmatpush.msra.mxu0 %v225
    %816 = vmatpush.msra.mxu0 %v193
    %817 = vmatpush.msra.mxu0 %v161
    %818 = vmatmul.f32.gmra.mxu0 %v340
    %v819 = vpop.f32.mrf.mxu0
    %v820 = vadd.f32 %v297, %v819
    %821 = vdwg.mxu0
    %822 = vmatpush.msra.mxu0 0.0
    %823 = vmatpush.msra.mxu0 0.0
    %824 = vmatpush.msra.mxu0 0.0
    %825 = vmatpush.msra.mxu0 0.0
    %826 = vmatpush.msra.mxu0 0.0
    %827 = vmatpush.msra.mxu0 0.0
    %828 = vmatpush.msra.mxu0 0.0
    %829 = vmatpush.msra.mxu0 0.0
    %830 = vmatpush.msra.mxu0 0.0
    %831 = vmatpush.msra.mxu0 0.0
    %832 = vmatpush.msra.mxu0 0.0
    %833 = vmatpush.msra.mxu0 0.0
    %834 = vmatpush.msra.mxu0 %v258
    %835 = vmatpush.msra.mxu0 %v226
    %836 = vmatpush.msra.mxu0 %v194
    %837 = vmatpush.msra.mxu0 %v162
    %838 = vmatmul.f32.gmra.mxu0 %v340
    %v839 = vpop.f32.mrf.mxu0
    %v840 = vadd.f32 %v298, %v839
    %841 = vdwg.mxu0
    %842 = vmatpush.msra.mxu0 0.0
    %843 = vmatpush.msra.mxu0 0.0
    %844 = vmatpush.msra.mxu0 0.0
    %845 = vmatpush.msra.mxu0 0.0
    %846 = vmatpush.msra.mxu0 0.0
    %847 = vmatpush.msra.mxu0 0.0
    %848 = vmatpush.msra.mxu0 0.0
    %849 = vmatpush.msra.mxu0 0.0
    %850 = vmatpush.msra.mxu0 0.0
    %851 = vmatpush.msra.mxu0 0.0
    %852 = vmatpush.msra.mxu0 0.0
    %853 = vmatpush.msra.mxu0 0.0
    %854 = vmatpush.msra.mxu0 %v259
    %855 = vmatpush.msra.mxu0 %v227
    %856 = vmatpush.msra.mxu0 %v195
    %857 = vmatpush.msra.mxu0 %v163
    %858 = vmatmul.f32.gmra.mxu0 %v340
    %v859 = vpop.f32.mrf.mxu0
    %v860 = vadd.f32 %v299, %v859
    %861 = vdwg.mxu0
    %862 = vmatpush.msra.mxu0 0.0
    %863 = vmatpush.msra.mxu0 0.0
    %864 = vmatpush.msra.mxu0 0.0
    %865 = vmatpush.msra.mxu0 0.0
    %866 = vmatpush.msra.mxu0 0.0
    %867 = vmatpush.msra.mxu0 0.0
    %868 = vmatpush.msra.mxu0 0.0
    %869 = vmatpush.msra.mxu0 0.0
    %870 = vmatpush.msra.mxu0 0.0
    %871 = vmatpush.msra.mxu0 0.0
    %872 = vmatpush.msra.mxu0 0.0
    %873 = vmatpush.msra.mxu0 0.0
    %874 = vmatpush.msra.mxu0 %v260
    %875 = vmatpush.msra.mxu0 %v228
    %876 = vmatpush.msra.mxu0 %v196
    %877 = vmatpush.msra.mxu0 %v164
    %878 = vmatmul.f32.gmra.mxu0 %v340
    %v879 = vpop.f32.mrf.mxu0
    %v880 = vadd.f32 %v300, %v879
    %881 = vdwg.mxu0
    %882 = vmatpush.msra.mxu0 0.0
    %883 = vmatpush.msra.mxu0 0.0
    %884 = vmatpush.msra.mxu0 0.0
    %885 = vmatpush.msra.mxu0 0.0
    %886 = vmatpush.msra.mxu0 0.0
    %887 = vmatpush.msra.mxu0 0.0
    %888 = vmatpush.msra.mxu0 0.0
    %889 = vmatpush.msra.mxu0 0.0
    %890 = vmatpush.msra.mxu0 0.0
    %891 = vmatpush.msra.mxu0 0.0
    %892 = vmatpush.msra.mxu0 0.0
    %893 = vmatpush.msra.mxu0 0.0
    %894 = vmatpush.msra.mxu0 %v261
    %895 = vmatpush.msra.mxu0 %v229
    %896 = vmatpush.msra.mxu0 %v197
    %897 = vmatpush.msra.mxu0 %v165
    %898 = vmatmul.f32.gmra.mxu0 %v340
    %v899 = vpop.f32.mrf.mxu0
    %v900 = vadd.f32 %v301, %v899
    %901 = vdwg.mxu0
    %902 = vmatpush.msra.mxu0 0.0
    %903 = vmatpush.msra.mxu0 0.0
    %904 = vmatpush.msra.mxu0 0.0
    %905 = vmatpush.msra.mxu0 0.0
    %906 = vmatpush.msra.mxu0 0.0
    %907 = vmatpush.msra.mxu0 0.0
    %908 = vmatpush.msra.mxu0 0.0
    %909 = vmatpush.msra.mxu0 0.0
    %910 = vmatpush.msra.mxu0 0.0
    %911 = vmatpush.msra.mxu0 0.0
    %912 = vmatpush.msra.mxu0 0.0
    %913 = vmatpush.msra.mxu0 0.0
    %914 = vmatpush.msra.mxu0 %v262
    %915 = vmatpush.msra.mxu0 %v230
    %916 = vmatpush.msra.mxu0 %v198
    %917 = vmatpush.msra.mxu0 %v166
    %918 = vmatmul.f32.gmra.mxu0 %v340
    %v919 = vpop.f32.mrf.mxu0
    %v920 = vadd.f32 %v302, %v919
    %921 = vdwg.mxu0
    %922 = vmatpush.msra.mxu0 0.0
    %923 = vmatpush.msra.mxu0 0.0
    %924 = vmatpush.msra.mxu0 0.0
    %925 = vmatpush.msra.mxu0 0.0
    %926 = vmatpush.msra.mxu0 0.0
    %927 = vmatpush.msra.mxu0 0.0
    %928 = vmatpush.msra.mxu0 0.0
    %929 = vmatpush.msra.mxu0 0.0
    %930 = vmatpush.msra.mxu0 0.0
    %931 = vmatpush.msra.mxu0 0.0
    %932 = vmatpush.msra.mxu0 0.0
    %933 = vmatpush.msra.mxu0 0.0
    %934 = vmatpush.msra.mxu0 %v263
    %935 = vmatpush.msra.mxu0 %v231
    %936 = vmatpush.msra.mxu0 %v199
    %937 = vmatpush.msra.mxu0 %v167
    %938 = vmatmul.f32.gmra.mxu0 %v340
    %v939 = vpop.f32.mrf.mxu0
    %v940 = vadd.f32 %v303, %v939
    %941 = vdwg.mxu0
    %942 = vmatpush.msra.mxu0 0.0
    %943 = vmatpush.msra.mxu0 0.0
    %944 = vmatpush.msra.mxu0 0.0
    %945 = vmatpush.msra.mxu0 0.0
    %946 = vmatpush.msra.mxu0 0.0
    %947 = vmatpush.msra.mxu0 0.0
    %948 = vmatpush.msra.mxu0 0.0
    %949 = vmatpush.msra.mxu0 0.0
    %950 = vmatpush.msra.mxu0 0.0
    %951 = vmatpush.msra.mxu0 0.0
    %952 = vmatpush.msra.mxu0 0.0
    %953 = vmatpush.msra.mxu0 0.0
    %954 = vmatpush.msra.mxu0 %v264
    %955 = vmatpush.msra.mxu0 %v232
    %956 = vmatpush.msra.mxu0 %v200
    %957 = vmatpush.msra.mxu0 %v168
    %958 = vmatmul.f32.gmra.mxu0 %v340
    %v959 = vpop.f32.mrf.mxu0
    %v960 = vadd.f32 %v304, %v959
    %961 = vdwg.mxu0
    %962 = vmatpush.msra.mxu0 0.0
    %963 = vmatpush.msra.mxu0 0.0
    %964 = vmatpush.msra.mxu0 0.0
    %965 = vmatpush.msra.mxu0 0.0
    %966 = vmatpush.msra.mxu0 0.0
    %967 = vmatpush.msra.mxu0 0.0
    %968 = vmatpush.msra.mxu0 0.0
    %969 = vmatpush.msra.mxu0 0.0
    %970 = vmatpush.msra.mxu0 0.0
    %971 = vmatpush.msra.mxu0 0.0
    %972 = vmatpush.msra.mxu0 0.0
    %973 = vmatpush.msra.mxu0 0.0
    %974 = vmatpush.msra.mxu0 %v265
    %975 = vmatpush.msra.mxu0 %v233
    %976 = vmatpush.msra.mxu0 %v201
    %977 = vmatpush.msra.mxu0 %v169
    %978 = vmatmul.f32.gmra.mxu0 %v340
    %v979 = vpop.f32.mrf.mxu0
    %v980 = vadd.f32 %v305, %v979
    %981 = vdwg.mxu0
    %v982 = vmax.f32 %v360, 0.0
    %v983 = vmax.f32 %v380, 0.0
    %v984 = vmax.f32 %v400, 0.0
    %v985 = vmax.f32 %v420, 0.0
    %v986 = vmax.f32 %v440, 0.0
    %v987 = vmax.f32 %v460, 0.0
    %v988 = vmax.f32 %v480, 0.0
    %v989 = vmax.f32 %v500, 0.0
    %v990 = vmax.f32 %v520, 0.0
    %v991 = vmax.f32 %v540, 0.0
    %v992 = vmax.f32 %v560, 0.0
    %v993 = vmax.f32 %v580, 0.0
    %v994 = vmax.f32 %v600, 0.0
    %v995 = vmax.f32 %v620, 0.0
    %v996 = vmax.f32 %v640, 0.0
    %v997 = vmax.f32 %v660, 0.0
    %v998 = vmax.f32 %v680, 0.0
    %v999 = vmax.f32 %v700, 0.0
    %v1000 = vmax.f32 %v720, 0.0
    %v1001 = vmax.f32 %v740, 0.0
    %v1002 = vmax.f32 %v760, 0.0
    %v1003 = vmax.f32 %v780, 0.0
    %v1004 = vmax.f32 %v800, 0.0
    %v1005 = vmax.f32 %v820, 0.0
    %v1006 = vmax.f32 %v840, 0.0
    %v1007 = vmax.f32 %v860, 0.0
    %v1008 = vmax.f32 %v880, 0.0
    %v1009 = vmax.f32 %v900, 0.0
    %v1010 = vmax.f32 %v920, 0.0
    %v1011 = vmax.f32 %v940, 0.0
    %v1012 = vmax.f32 %v960, 0.0
    %v1013 = vmax.f32 %v980, 0.0
    %1014 = vst [vmem:[#allocation2] sm:$0xff] %v982
    %1015 = vst [vmem:[#allocation2 + $0x8] sm:$0xff] %v983
    %1016 = vst [vmem:[#allocation2 + $0x10] sm:$0xff] %v984
    %1017 = vst [vmem:[#allocation2 + $0x18] sm:$0xff] %v985
    %1018 = vst [vmem:[#allocation2 + $0x20] sm:$0xff] %v986
    %1019 = vst [vmem:[#allocation2 + $0x28] sm:$0xff] %v987
    %1020 = vst [vmem:[#allocation2 + $0x30] sm:$0xff] %v988
    %1021 = vst [vmem:[#allocation2 + $0x38] sm:$0xff] %v989
    %1022 = vst [vmem:[#allocation2 + $0x40] sm:$0xff] %v990
    %1023 = vst [vmem:[#allocation2 + $0x48] sm:$0xff] %v991
    %1024 = vst [vmem:[#allocation2 + $0x50] sm:$0xff] %v992
    %1025 = vst [vmem:[#allocation2 + $0x58] sm:$0xff] %v993
    %1026 = vst [vmem:[#allocation2 + $0x60] sm:$0xff] %v994
    %1027 = vst [vmem:[#allocation2 + $0x68] sm:$0xff] %v995
    %1028 = vst [vmem:[#allocation2 + $0x70] sm:$0xff] %v996
    %1029 = vst [vmem:[#allocation2 + $0x78] sm:$0xff] %v997
    %1030 = vst [vmem:[#allocation2 + $0x80] sm:$0xff] %v998
    %1031 = vst [vmem:[#allocation2 + $0x88] sm:$0xff] %v999
    %1032 = vst [vmem:[#allocation2 + $0x90] sm:$0xff] %v1000
    %1033 = vst [vmem:[#allocation2 + $0x98] sm:$0xff] %v1001
    %1034 = vst [vmem:[#allocation2 + $0xa0] sm:$0xff] %v1002
    %1035 = vst [vmem:[#allocation2 + $0xa8] sm:$0xff] %v1003
    %1036 = vst [vmem:[#allocation2 + $0xb0] sm:$0xff] %v1004
    %1037 = vst [vmem:[#allocation2 + $0xb8] sm:$0xff] %v1005
    %1038 = vst [vmem:[#allocation2 + $0xc0] sm:$0xff] %v1006
    %1039 = vst [vmem:[#allocation2 + $0xc8] sm:$0xff] %v1007
    %1040 = vst [vmem:[#allocation2 + $0xd0] sm:$0xff] %v1008
    %1041 = vst [vmem:[#allocation2 + $0xd8] sm:$0xff] %v1009
    %1042 = vst [vmem:[#allocation2 + $0xe0] sm:$0xff] %v1010
    %1043 = vst [vmem:[#allocation2 + $0xe8] sm:$0xff] %v1011
    %1044 = vst [vmem:[#allocation2 + $0xf0] sm:$0xff] %v1012
    %1045 = vst [vmem:[#allocation2 + $0xf8] sm:$0xff] %v1013
    %v1046 = vld [vmem:[#allocation2] sm:$0xff]
    %v1047 = vld [vmem:[#allocation2 + $0x8] sm:$0xff]
    %v1048 = vld [vmem:[#allocation2 + $0x10] sm:$0xff]
    %v1049 = vld [vmem:[#allocation2 + $0x18] sm:$0xff]
    %v1050 = vld [vmem:[#allocation2 + $0x20] sm:$0xff]
    %v1051 = vld [vmem:[#allocation2 + $0x28] sm:$0xff]
    %v1052 = vld [vmem:[#allocation2 + $0x30] sm:$0xff]
    %v1053 = vld [vmem:[#allocation2 + $0x38] sm:$0xff]
    %v1054 = vld [vmem:[#allocation2 + $0x40] sm:$0xff]
    %v1055 = vld [vmem:[#allocation2 + $0x48] sm:$0xff]
    %v1056 = vld [vmem:[#allocation2 + $0x50] sm:$0xff]
    %v1057 = vld [vmem:[#allocation2 + $0x58] sm:$0xff]
    %v1058 = vld [vmem:[#allocation2 + $0x60] sm:$0xff]
    %v1059 = vld [vmem:[#allocation2 + $0x68] sm:$0xff]
    %v1060 = vld [vmem:[#allocation2 + $0x70] sm:$0xff]
    %v1061 = vld [vmem:[#allocation2 + $0x78] sm:$0xff]
    %v1062 = vld [vmem:[#allocation2 + $0x80] sm:$0xff]
    %v1063 = vld [vmem:[#allocation2 + $0x88] sm:$0xff]
    %v1064 = vld [vmem:[#allocation2 + $0x90] sm:$0xff]
    %v1065 = vld [vmem:[#allocation2 + $0x98] sm:$0xff]
    %v1066 = vld [vmem:[#allocation2 + $0xa0] sm:$0xff]
    %v1067 = vld [vmem:[#allocation2 + $0xa8] sm:$0xff]
    %v1068 = vld [vmem:[#allocation2 + $0xb0] sm:$0xff]
    %v1069 = vld [vmem:[#allocation2 + $0xb8] sm:$0xff]
    %v1070 = vld [vmem:[#allocation2 + $0xc0] sm:$0xff]
    %v1071 = vld [vmem:[#allocation2 + $0xc8] sm:$0xff]
    %v1072 = vld [vmem:[#allocation2 + $0xd0] sm:$0xff]
    %v1073 = vld [vmem:[#allocation2 + $0xd8] sm:$0xff]
    %v1074 = vld [vmem:[#allocation2 + $0xe0] sm:$0xff]
    %v1075 = vld [vmem:[#allocation2 + $0xe8] sm:$0xff]
    %v1076 = vld [vmem:[#allocation2 + $0xf0] sm:$0xff]
    %v1077 = vld [vmem:[#allocation2 + $0xf8] sm:$0xff]
    %v1078 = vld [vmem:[#allocation12] sm:$0xff]
    %v1079 = vld [vmem:[#allocation12 + $0x8] sm:$0xff]
    %v1080 = vld [vmem:[#allocation12 + $0x10] sm:$0xff]
    %v1081 = vld [vmem:[#allocation12 + $0x18] sm:$0xff]
    %v1082 = vld [vmem:[#allocation12 + $0x20] sm:$0xff]
    %v1083 = vld [vmem:[#allocation12 + $0x28] sm:$0xff]
    %v1084 = vld [vmem:[#allocation12 + $0x30] sm:$0xff]
    %v1085 = vld [vmem:[#allocation12 + $0x38] sm:$0xff]
    %v1086 = vld [vmem:[#allocation12 + $0x40] sm:$0xff]
    %v1087 = vld [vmem:[#allocation12 + $0x48] sm:$0xff]
    %v1088 = vld [vmem:[#allocation12 + $0x50] sm:$0xff]
    %v1089 = vld [vmem:[#allocation12 + $0x58] sm:$0xff]
    %v1090 = vld [vmem:[#allocation12 + $0x60] sm:$0xff]
    %v1091 = vld [vmem:[#allocation12 + $0x68] sm:$0xff]
    %v1092 = vld [vmem:[#allocation12 + $0x70] sm:$0xff]
    %v1093 = vld [vmem:[#allocation12 + $0x78] sm:$0xff]
    %v1094 = vld [vmem:[#allocation12 + $0x80] sm:$0xff]
    %v1095 = vld [vmem:[#allocation12 + $0x88] sm:$0xff]
    %v1096 = vld [vmem:[#allocation12 + $0x90] sm:$0xff]
    %v1097 = vld [vmem:[#allocation12 + $0x98] sm:$0xff]
    %v1098 = vld [vmem:[#allocation12 + $0xa0] sm:$0xff]
    %v1099 = vld [vmem:[#allocation12 + $0xa8] sm:$0xff]
    %v1100 = vld [vmem:[#allocation12 + $0xb0] sm:$0xff]
    %v1101 = vld [vmem:[#allocation12 + $0xb8] sm:$0xff]
    %1102 = vmatpush.msra.mxu0 %v1076
    %1103 = vmatpush.msra.mxu0 %v1074
    %1104 = vmatpush.msra.mxu0 %v1072
    %1105 = vmatpush.msra.mxu0 %v1070
    %1106 = vmatpush.msra.mxu0 %v1068
    %1107 = vmatpush.msra.mxu0 %v1066
    %1108 = vmatpush.msra.mxu0 %v1064
    %1109 = vmatpush.msra.mxu0 %v1062
    %1110 = vmatpush.msra.mxu0 %v1060
    %1111 = vmatpush.msra.mxu0 %v1058
    %1112 = vmatpush.msra.mxu0 %v1056
    %1113 = vmatpush.msra.mxu0 %v1054
    %1114 = vmatpush.msra.mxu0 %v1052
    %1115 = vmatpush.msra.mxu0 %v1050
    %1116 = vmatpush.msra.mxu0 %v1048
    %1117 = vmatpush.msra.mxu0 %v1046
    %1118 = vmatmul.f32.gmra.mxu0 %v1078
    %v1119 = vpop.f32.mrf.mxu0
    %v1120 = vadd.f32 0.0, %v1119
    %1121 = vmatmul.f32.gmra.mxu0 %v1079
    %v1122 = vpop.f32.mrf.mxu0
    %v1123 = vadd.f32 0.0, %v1122
    %1124 = vmatmul.f32.gmra.mxu0 %v1080
    %v1125 = vpop.f32.mrf.mxu0
    %v1126 = vadd.f32 0.0, %v1125
    %1127 = vmatmul.f32.gmra.mxu0 %v1081
    %v1128 = vpop.f32.mrf.mxu0
    %v1129 = vadd.f32 0.0, %v1128
    %1130 = vmatmul.f32.gmra.mxu0 %v1082
    %v1131 = vpop.f32.mrf.mxu0
    %v1132 = vadd.f32 0.0, %v1131
    %1133 = vmatmul.f32.gmra.mxu0 %v1083
    %v1134 = vpop.f32.mrf.mxu0
    %v1135 = vadd.f32 0.0, %v1134
    %1136 = vmatmul.f32.gmra.mxu0 %v1084
    %v1137 = vpop.f32.mrf.mxu0
    %v1138 = vadd.f32 0.0, %v1137
    %1139 = vmatmul.f32.gmra.mxu0 %v1085
    %v1140 = vpop.f32.mrf.mxu0
    %v1141 = vadd.f32 0.0, %v1140
    %1142 = vmatmul.f32.gmra.mxu0 %v1086
    %v1143 = vpop.f32.mrf.mxu0
    %v1144 = vadd.f32 0.0, %v1143
    %1145 = vmatmul.f32.gmra.mxu0 %v1087
    %v1146 = vpop.f32.mrf.mxu0
    %v1147 = vadd.f32 0.0, %v1146
    %1148 = vmatmul.f32.gmra.mxu0 %v1088
    %v1149 = vpop.f32.mrf.mxu0
    %v1150 = vadd.f32 0.0, %v1149
    %1151 = vmatmul.f32.gmra.mxu0 %v1089
    %v1152 = vpop.f32.mrf.mxu0
    %v1153 = vadd.f32 0.0, %v1152
    %1154 = vmatmul.f32.gmra.mxu0 %v1090
    %v1155 = vpop.f32.mrf.mxu0
    %v1156 = vadd.f32 0.0, %v1155
    %1157 = vmatmul.f32.gmra.mxu0 %v1091
    %v1158 = vpop.f32.mrf.mxu0
    %v1159 = vadd.f32 0.0, %v1158
    %1160 = vmatmul.f32.gmra.mxu0 %v1092
    %v1161 = vpop.f32.mrf.mxu0
    %v1162 = vadd.f32 0.0, %v1161
    %1163 = vmatmul.f32.gmra.mxu0 %v1093
    %v1164 = vpop.f32.mrf.mxu0
    %v1165 = vadd.f32 0.0, %v1164
    %1166 = vmatmul.f32.gmra.mxu0 %v1094
    %v1167 = vpop.f32.mrf.mxu0
    %v1168 = vadd.f32 0.0, %v1167
    %1169 = vmatmul.f32.gmra.mxu0 %v1095
    %v1170 = vpop.f32.mrf.mxu0
    %v1171 = vadd.f32 0.0, %v1170
    %1172 = vmatmul.f32.gmra.mxu0 %v1096
    %v1173 = vpop.f32.mrf.mxu0
    %v1174 = vadd.f32 0.0, %v1173
    %1175 = vmatmul.f32.gmra.mxu0 %v1097
    %v1176 = vpop.f32.mrf.mxu0
    %v1177 = vadd.f32 0.0, %v1176
    %1178 = vmatmul.f32.gmra.mxu0 %v1098
    %v1179 = vpop.f32.mrf.mxu0
    %v1180 = vadd.f32 0.0, %v1179
    %1181 = vmatmul.f32.gmra.mxu0 %v1099
    %v1182 = vpop.f32.mrf.mxu0
    %v1183 = vadd.f32 0.0, %v1182
    %1184 = vmatmul.f32.gmra.mxu0 %v1100
    %v1185 = vpop.f32.mrf.mxu0
    %v1186 = vadd.f32 0.0, %v1185
    %1187 = vmatmul.f32.gmra.mxu0 %v1101
    %v1188 = vpop.f32.mrf.mxu0
    %v1189 = vadd.f32 0.0, %v1188
    %1190 = vdwg.mxu0
    %1191 = vmatpush.msra.mxu0 %v1077
    %1192 = vmatpush.msra.mxu0 %v1075
    %1193 = vmatpush.msra.mxu0 %v1073
    %1194 = vmatpush.msra.mxu0 %v1071
    %1195 = vmatpush.msra.mxu0 %v1069
    %1196 = vmatpush.msra.mxu0 %v1067
    %1197 = vmatpush.msra.mxu0 %v1065
    %1198 = vmatpush.msra.mxu0 %v1063
    %1199 = vmatpush.msra.mxu0 %v1061
    %1200 = vmatpush.msra.mxu0 %v1059
    %1201 = vmatpush.msra.mxu0 %v1057
    %1202 = vmatpush.msra.mxu0 %v1055
    %1203 = vmatpush.msra.mxu0 %v1053
    %1204 = vmatpush.msra.mxu0 %v1051
    %1205 = vmatpush.msra.mxu0 %v1049
    %1206 = vmatpush.msra.mxu0 %v1047
    %1207 = vmatmul.f32.gmra.mxu0 %v1078
    %v1208 = vpop.f32.mrf.mxu0
    %v1209 = vadd.f32 0.0, %v1208
    %1210 = vmatmul.f32.gmra.mxu0 %v1079
    %v1211 = vpop.f32.mrf.mxu0
    %v1212 = vadd.f32 0.0, %v1211
    %1213 = vmatmul.f32.gmra.mxu0 %v1080
    %v1214 = vpop.f32.mrf.mxu0
    %v1215 = vadd.f32 0.0, %v1214
    %1216 = vmatmul.f32.gmra.mxu0 %v1081
    %v1217 = vpop.f32.mrf.mxu0
    %v1218 = vadd.f32 0.0, %v1217
    %1219 = vmatmul.f32.gmra.mxu0 %v1082
    %v1220 = vpop.f32.mrf.mxu0
    %v1221 = vadd.f32 0.0, %v1220
    %1222 = vmatmul.f32.gmra.mxu0 %v1083
    %v1223 = vpop.f32.mrf.mxu0
    %v1224 = vadd.f32 0.0, %v1223
    %1225 = vmatmul.f32.gmra.mxu0 %v1084
    %v1226 = vpop.f32.mrf.mxu0
    %v1227 = vadd.f32 0.0, %v1226
    %1228 = vmatmul.f32.gmra.mxu0 %v1085
    %v1229 = vpop.f32.mrf.mxu0
    %v1230 = vadd.f32 0.0, %v1229
    %1231 = vmatmul.f32.gmra.mxu0 %v1086
    %v1232 = vpop.f32.mrf.mxu0
    %v1233 = vadd.f32 0.0, %v1232
    %1234 = vmatmul.f32.gmra.mxu0 %v1087
    %v1235 = vpop.f32.mrf.mxu0
    %v1236 = vadd.f32 0.0, %v1235
    %1237 = vmatmul.f32.gmra.mxu0 %v1088
    %v1238 = vpop.f32.mrf.mxu0
    %v1239 = vadd.f32 0.0, %v1238
    %1240 = vmatmul.f32.gmra.mxu0 %v1089
    %v1241 = vpop.f32.mrf.mxu0
    %v1242 = vadd.f32 0.0, %v1241
    %1243 = vmatmul.f32.gmra.mxu0 %v1090
    %v1244 = vpop.f32.mrf.mxu0
    %v1245 = vadd.f32 0.0, %v1244
    %1246 = vmatmul.f32.gmra.mxu0 %v1091
    %v1247 = vpop.f32.mrf.mxu0
    %v1248 = vadd.f32 0.0, %v1247
    %1249 = vmatmul.f32.gmra.mxu0 %v1092
    %v1250 = vpop.f32.mrf.mxu0
    %v1251 = vadd.f32 0.0, %v1250
    %1252 = vmatmul.f32.gmra.mxu0 %v1093
    %v1253 = vpop.f32.mrf.mxu0
    %v1254 = vadd.f32 0.0, %v1253
    %1255 = vmatmul.f32.gmra.mxu0 %v1094
    %v1256 = vpop.f32.mrf.mxu0
    %v1257 = vadd.f32 0.0, %v1256
    %1258 = vmatmul.f32.gmra.mxu0 %v1095
    %v1259 = vpop.f32.mrf.mxu0
    %v1260 = vadd.f32 0.0, %v1259
    %1261 = vmatmul.f32.gmra.mxu0 %v1096
    %v1262 = vpop.f32.mrf.mxu0
    %v1263 = vadd.f32 0.0, %v1262
    %1264 = vmatmul.f32.gmra.mxu0 %v1097
    %v1265 = vpop.f32.mrf.mxu0
    %v1266 = vadd.f32 0.0, %v1265
    %1267 = vmatmul.f32.gmra.mxu0 %v1098
    %v1268 = vpop.f32.mrf.mxu0
    %v1269 = vadd.f32 0.0, %v1268
    %1270 = vmatmul.f32.gmra.mxu0 %v1099
    %v1271 = vpop.f32.mrf.mxu0
    %v1272 = vadd.f32 0.0, %v1271
    %1273 = vmatmul.f32.gmra.mxu0 %v1100
    %v1274 = vpop.f32.mrf.mxu0
    %v1275 = vadd.f32 0.0, %v1274
    %1276 = vmatmul.f32.gmra.mxu0 %v1101
    %v1277 = vpop.f32.mrf.mxu0
    %v1278 = vadd.f32 0.0, %v1277
    %1279 = vdwg.mxu0
    %v1280 = vld [vmem:[%s6] sm:$0xff]
    %v1281 = vld [vmem:[%s6 + $0x8] sm:$0xff]
    %v1282 = vld [vmem:[%s6 + $0x10] sm:$0xff]
    %v1283 = vld [vmem:[%s6 + $0x18] sm:$0xff]
    %v1284 = vld [vmem:[%s6 + $0x20] sm:$0xff]
    %v1285 = vld [vmem:[%s6 + $0x28] sm:$0xff]
    %v1286 = vld [vmem:[%s6 + $0x30] sm:$0xff]
    %v1287 = vld [vmem:[%s6 + $0x38] sm:$0xff]
    %1289 = vset.pattern.permute.xlu0 0
    %1290 = vperm.xlu0 %1289, %v1280
    %v1291 = vpop.permute.xlu0 %1290
    %1294 = vset.pattern.permute.xlu0 0
    %1295 = vperm.xlu0 %1294, %v1281
    %v1296 = vpop.permute.xlu0 %1295
    %1299 = vset.pattern.permute.xlu0 0
    %1300 = vperm.xlu0 %1299, %v1282
    %v1301 = vpop.permute.xlu0 %1300
    %1304 = vset.pattern.permute.xlu0 0
    %1305 = vperm.xlu0 %1304, %v1283
    %v1306 = vpop.permute.xlu0 %1305
    %1309 = vset.pattern.permute.xlu0 0
    %1310 = vperm.xlu0 %1309, %v1284
    %v1311 = vpop.permute.xlu0 %1310
    %1314 = vset.pattern.permute.xlu0 0
    %1315 = vperm.xlu0 %1314, %v1285
    %v1316 = vpop.permute.xlu0 %1315
    %1319 = vset.pattern.permute.xlu0 0
    %1320 = vperm.xlu0 %1319, %v1286
    %v1321 = vpop.permute.xlu0 %1320
    %1324 = vset.pattern.permute.xlu0 0
    %1325 = vperm.xlu0 %1324, %v1287
    %v1326 = vpop.permute.xlu0 %1325
    %v1328 = vadd.f32 %v1144, %v1291
    %v1329 = vadd.f32 %v1233, %v1291
    %v1330 = vadd.f32 %v1147, %v1296
    %v1331 = vadd.f32 %v1236, %v1296
    %v1332 = vadd.f32 %v1150, %v1301
    %v1333 = vadd.f32 %v1239, %v1301
    %v1334 = vadd.f32 %v1153, %v1306
    %v1335 = vadd.f32 %v1242, %v1306
    %v1336 = vadd.f32 %v1156, %v1311
    %v1337 = vadd.f32 %v1245, %v1311
    %v1338 = vadd.f32 %v1159, %v1316
    %v1339 = vadd.f32 %v1248, %v1316
    %v1340 = vadd.f32 %v1162, %v1321
    %v1341 = vadd.f32 %v1251, %v1321
    %v1342 = vadd.f32 %v1165, %v1326
    %v1343 = vadd.f32 %v1254, %v1326
    %v1344 = vmax.f32 %v1328, 0.0
    %v1345 = vmax.f32 %v1329, 0.0
    %v1346 = vmax.f32 %v1330, 0.0
    %v1347 = vmax.f32 %v1331, 0.0
    %v1348 = vmax.f32 %v1332, 0.0
    %v1349 = vmax.f32 %v1333, 0.0
    %v1350 = vmax.f32 %v1334, 0.0
    %v1351 = vmax.f32 %v1335, 0.0
    %v1352 = vmax.f32 %v1336, 0.0
    %v1353 = vmax.f32 %v1337, 0.0
    %v1354 = vmax.f32 %v1338, 0.0
    %v1355 = vmax.f32 %v1339, 0.0
    %v1356 = vmax.f32 %v1340, 0.0
    %v1357 = vmax.f32 %v1341, 0.0
    %v1358 = vmax.f32 %v1342, 0.0
    %v1359 = vmax.f32 %v1343, 0.0
    %1376 = vrot.lane.b32.xlu0 %v1120, 127
    %v1377 = vpop.permute.xlu0 %1376
    %1378 = vrot.lane.b32.xlu0 %v1209, 127
    %v1379 = vpop.permute.xlu0 %1378
    %1380 = vrot.lane.b32.xlu0 %v1123, 127
    %v1381 = vpop.permute.xlu0 %1380
    %1382 = vrot.lane.b32.xlu0 %v1212, 127
    %v1383 = vpop.permute.xlu0 %1382
    %1384 = vrot.lane.b32.xlu0 %v1126, 127
    %v1385 = vpop.permute.xlu0 %1384
    %1386 = vrot.lane.b32.xlu0 %v1215, 127
    %v1387 = vpop.permute.xlu0 %1386
    %1388 = vrot.lane.b32.xlu0 %v1129, 127
    %v1389 = vpop.permute.xlu0 %1388
    %1390 = vrot.lane.b32.xlu0 %v1218, 127
    %v1391 = vpop.permute.xlu0 %1390
    %1392 = vrot.lane.b32.xlu0 %v1132, 127
    %v1393 = vpop.permute.xlu0 %1392
    %1394 = vrot.lane.b32.xlu0 %v1221, 127
    %v1395 = vpop.permute.xlu0 %1394
    %1396 = vrot.lane.b32.xlu0 %v1135, 127
    %v1397 = vpop.permute.xlu0 %1396
    %1398 = vrot.lane.b32.xlu0 %v1224, 127
    %v1399 = vpop.permute.xlu0 %1398
    %1400 = vrot.lane.b32.xlu0 %v1138, 127
    %v1401 = vpop.permute.xlu0 %1400
    %1402 = vrot.lane.b32.xlu0 %v1227, 127
    %v1403 = vpop.permute.xlu0 %1402
    %1404 = vrot.lane.b32.xlu0 %v1141, 127
    %v1405 = vpop.permute.xlu0 %1404
    %1406 = vrot.lane.b32.xlu0 %v1230, 127
    %v1407 = vpop.permute.xlu0 %1406
    %vm1408 = vcmask 1039360
    %v1409 = vsel %vm1408, %v1377, %v1379
    %v1410 = vsel %vm1408, %v1381, %v1383
    %v1411 = vsel %vm1408, %v1385, %v1387
    %v1412 = vsel %vm1408, %v1389, %v1391
    %v1413 = vsel %vm1408, %v1393, %v1395
    %v1414 = vsel %vm1408, %v1397, %v1399
    %v1415 = vsel %vm1408, %v1401, %v1403
    %v1416 = vsel %vm1408, %v1405, %v1407
    %v1433 = vsel %vm1408, %v1379, 0.0
    %v1434 = vsel %vm1408, %v1383, 0.0
    %v1435 = vsel %vm1408, %v1387, 0.0
    %v1436 = vsel %vm1408, %v1391, 0.0
    %v1437 = vsel %vm1408, %v1395, 0.0
    %v1438 = vsel %vm1408, %v1399, 0.0
    %v1439 = vsel %vm1408, %v1403, 0.0
    %v1440 = vsel %vm1408, %v1407, 0.0
    %v1441 = vadd.f32 %v1409, %v1168
    %v1442 = vadd.f32 %v1433, %v1257
    %v1443 = vadd.f32 %v1410, %v1171
    %v1444 = vadd.f32 %v1434, %v1260
    %v1445 = vadd.f32 %v1411, %v1174
    %v1446 = vadd.f32 %v1435, %v1263
    %v1447 = vadd.f32 %v1412, %v1177
    %v1448 = vadd.f32 %v1436, %v1266
    %v1449 = vadd.f32 %v1413, %v1180
    %v1450 = vadd.f32 %v1437, %v1269
    %v1451 = vadd.f32 %v1414, %v1183
    %v1452 = vadd.f32 %v1438, %v1272
    %v1453 = vadd.f32 %v1415, %v1186
    %v1454 = vadd.f32 %v1439, %v1275
    %v1455 = vadd.f32 %v1416, %v1189
    %v1456 = vadd.f32 %v1440, %v1278
    %v1457 = vadd.f32 %v1441, %v1291
    %v1458 = vadd.f32 %v1442, %v1291
    %v1459 = vadd.f32 %v1443, %v1296
    %v1460 = vadd.f32 %v1444, %v1296
    %v1461 = vadd.f32 %v1445, %v1301
    %v1462 = vadd.f32 %v1446, %v1301
    %v1463 = vadd.f32 %v1447, %v1306
    %v1464 = vadd.f32 %v1448, %v1306
    %v1465 = vadd.f32 %v1449, %v1311
    %v1466 = vadd.f32 %v1450, %v1311
    %v1467 = vadd.f32 %v1451, %v1316
    %v1468 = vadd.f32 %v1452, %v1316
    %v1469 = vadd.f32 %v1453, %v1321
    %v1470 = vadd.f32 %v1454, %v1321
    %v1471 = vadd.f32 %v1455, %v1326
    %v1472 = vadd.f32 %v1456, %v1326
    %v1473 = vmax.f32 %v1457, 0.0
    %v1474 = vmax.f32 %v1458, 0.0
    %v1475 = vmax.f32 %v1459, 0.0
    %v1476 = vmax.f32 %v1460, 0.0
    %v1477 = vmax.f32 %v1461, 0.0
    %v1478 = vmax.f32 %v1462, 0.0
    %v1479 = vmax.f32 %v1463, 0.0
    %v1480 = vmax.f32 %v1464, 0.0
    %v1481 = vmax.f32 %v1465, 0.0
    %v1482 = vmax.f32 %v1466, 0.0
    %v1483 = vmax.f32 %v1467, 0.0
    %v1484 = vmax.f32 %v1468, 0.0
    %v1485 = vmax.f32 %v1469, 0.0
    %v1486 = vmax.f32 %v1470, 0.0
    %v1487 = vmax.f32 %v1471, 0.0
    %v1488 = vmax.f32 %v1472, 0.0
    %1505 = vrot.lane.b32.xlu0 %v1344, 127
    %v1506 = vpop.permute.xlu0 %1505
    %1507 = vrot.lane.b32.xlu0 %v1345, 127
    %v1508 = vpop.permute.xlu0 %1507
    %1509 = vrot.lane.b32.xlu0 %v1346, 127
    %v1510 = vpop.permute.xlu0 %1509
    %1511 = vrot.lane.b32.xlu0 %v1347, 127
    %v1512 = vpop.permute.xlu0 %1511
    %1513 = vrot.lane.b32.xlu0 %v1348, 127
    %v1514 = vpop.permute.xlu0 %1513
    %1515 = vrot.lane.b32.xlu0 %v1349, 127
    %v1516 = vpop.permute.xlu0 %1515
    %1517 = vrot.lane.b32.xlu0 %v1350, 127
    %v1518 = vpop.permute.xlu0 %1517
    %1519 = vrot.lane.b32.xlu0 %v1351, 127
    %v1520 = vpop.permute.xlu0 %1519
    %1521 = vrot.lane.b32.xlu0 %v1352, 127
    %v1522 = vpop.permute.xlu0 %1521
    %1523 = vrot.lane.b32.xlu0 %v1353, 127
    %v1524 = vpop.permute.xlu0 %1523
    %1525 = vrot.lane.b32.xlu0 %v1354, 127
    %v1526 = vpop.permute.xlu0 %1525
    %1527 = vrot.lane.b32.xlu0 %v1355, 127
    %v1528 = vpop.permute.xlu0 %1527
    %1529 = vrot.lane.b32.xlu0 %v1356, 127
    %v1530 = vpop.permute.xlu0 %1529
    %1531 = vrot.lane.b32.xlu0 %v1357, 127
    %v1532 = vpop.permute.xlu0 %1531
    %1533 = vrot.lane.b32.xlu0 %v1358, 127
    %v1534 = vpop.permute.xlu0 %1533
    %1535 = vrot.lane.b32.xlu0 %v1359, 127
    %v1536 = vpop.permute.xlu0 %1535
    %v1537 = vsel %vm1408, %v1506, %v1508
    %v1538 = vsel %vm1408, %v1510, %v1512
    %v1539 = vsel %vm1408, %v1514, %v1516
    %v1540 = vsel %vm1408, %v1518, %v1520
    %v1541 = vsel %vm1408, %v1522, %v1524
    %v1542 = vsel %vm1408, %v1526, %v1528
    %v1543 = vsel %vm1408, %v1530, %v1532
    %v1544 = vsel %vm1408, %v1534, %v1536
    %v1561 = vsel %vm1408, %v1508, 0.0
    %v1562 = vsel %vm1408, %v1512, 0.0
    %v1563 = vsel %vm1408, %v1516, 0.0
    %v1564 = vsel %vm1408, %v1520, 0.0
    %v1565 = vsel %vm1408, %v1524, 0.0
    %v1566 = vsel %vm1408, %v1528, 0.0
    %v1567 = vsel %vm1408, %v1532, 0.0
    %v1568 = vsel %vm1408, %v1536, 0.0
    %v1569 = vld [vmem:[%s7] sm:$0xff]
    %v1570 = vld [vmem:[%s7 + $0x8] sm:$0xff]
    %v1571 = vld [vmem:[%s7 + $0x10] sm:$0xff]
    %v1572 = vld [vmem:[%s7 + $0x18] sm:$0xff]
    %v1573 = vld [vmem:[%s7 + $0x20] sm:$0xff]
    %v1574 = vld [vmem:[%s7 + $0x28] sm:$0xff]
    %v1575 = vld [vmem:[%s7 + $0x30] sm:$0xff]
    %v1576 = vld [vmem:[%s7 + $0x38] sm:$0xff]
    %v1577 = vld [vmem:[#allocation3] sm:$0x1]
    %v1579 = vperm.slane %v1577, 0
    %1580 = vset.pattern.permute.xlu0 0
    %1581 = vperm.xlu0 %1580, %v1579
    %v1582 = vpop.permute.xlu0 %1581
    %vm1584 = vcmask 523264
    %v1586 = vsel %vm1584, %v1570, 0
    %v1589 = vsel %vm1584, %v1572, 0
    %v1592 = vsel %vm1584, %v1574, 0
    %v1595 = vsel %vm1584, %v1576, 0
    %1597 = vmatpush.msra.mxu0 %v1487
    %1598 = vmatpush.msra.mxu0 %v1485
    %1599 = vmatpush.msra.mxu0 %v1483
    %1600 = vmatpush.msra.mxu0 %v1481
    %1601 = vmatpush.msra.mxu0 %v1479
    %1602 = vmatpush.msra.mxu0 %v1477
    %1603 = vmatpush.msra.mxu0 %v1475
    %1604 = vmatpush.msra.mxu0 %v1473
    %1605 = vmatpush.msra.mxu0 %v1358
    %1606 = vmatpush.msra.mxu0 %v1356
    %1607 = vmatpush.msra.mxu0 %v1354
    %1608 = vmatpush.msra.mxu0 %v1352
    %1609 = vmatpush.msra.mxu0 %v1350
    %1610 = vmatpush.msra.mxu0 %v1348
    %1611 = vmatpush.msra.mxu0 %v1346
    %1612 = vmatpush.msra.mxu0 %v1344
    %1613 = vmatmul.f32.gmra.mxu0 %v1569
    %v1614 = vpop.f32.mrf.mxu0
    %v1615 = vadd.f32 %v1582, %v1614
    %1616 = vmatmul.f32.gmra.mxu0 %v1571
    %v1617 = vpop.f32.mrf.mxu0
    %v1618 = vadd.f32 %v1582, %v1617
    %1619 = vmatmul.f32.gmra.mxu0 %v1573
    %v1620 = vpop.f32.mrf.mxu0
    %v1621 = vadd.f32 %v1582, %v1620
    %1622 = vmatmul.f32.gmra.mxu0 %v1575
    %v1623 = vpop.f32.mrf.mxu0
    %v1624 = vadd.f32 %v1582, %v1623
    %1625 = vdwg.mxu0
    %1626 = vmatpush.msra.mxu0 0.0
    %1627 = vmatpush.msra.mxu0 0.0
    %1628 = vmatpush.msra.mxu0 0.0
    %1629 = vmatpush.msra.mxu0 0.0
    %1630 = vmatpush.msra.mxu0 0.0
    %1631 = vmatpush.msra.mxu0 0.0
    %1632 = vmatpush.msra.mxu0 0.0
    %1633 = vmatpush.msra.mxu0 0.0
    %1634 = vmatpush.msra.mxu0 %v1544
    %1635 = vmatpush.msra.mxu0 %v1543
    %1636 = vmatpush.msra.mxu0 %v1542
    %1637 = vmatpush.msra.mxu0 %v1541
    %1638 = vmatpush.msra.mxu0 %v1540
    %1639 = vmatpush.msra.mxu0 %v1539
    %1640 = vmatpush.msra.mxu0 %v1538
    %1641 = vmatpush.msra.mxu0 %v1537
    %1642 = vmatmul.f32.gmra.mxu0 %v1586
    %v1643 = vpop.f32.mrf.mxu0
    %v1644 = vadd.f32 %v1615, %v1643
    %1645 = vmatmul.f32.gmra.mxu0 %v1589
    %v1646 = vpop.f32.mrf.mxu0
    %v1647 = vadd.f32 %v1618, %v1646
    %1648 = vmatmul.f32.gmra.mxu0 %v1592
    %v1649 = vpop.f32.mrf.mxu0
    %v1650 = vadd.f32 %v1621, %v1649
    %1651 = vmatmul.f32.gmra.mxu0 %v1595
    %v1652 = vpop.f32.mrf.mxu0
    %v1653 = vadd.f32 %v1624, %v1652
    %1654 = vdwg.mxu0
    %1655 = vmatpush.msra.mxu0 %v1488
    %1656 = vmatpush.msra.mxu0 %v1486
    %1657 = vmatpush.msra.mxu0 %v1484
    %1658 = vmatpush.msra.mxu0 %v1482
    %1659 = vmatpush.msra.mxu0 %v1480
    %1660 = vmatpush.msra.mxu0 %v1478
    %1661 = vmatpush.msra.mxu0 %v1476
    %1662 = vmatpush.msra.mxu0 %v1474
    %1663 = vmatpush.msra.mxu0 %v1359
    %1664 = vmatpush.msra.mxu0 %v1357
    %1665 = vmatpush.msra.mxu0 %v1355
    %1666 = vmatpush.msra.mxu0 %v1353
    %1667 = vmatpush.msra.mxu0 %v1351
    %1668 = vmatpush.msra.mxu0 %v1349
    %1669 = vmatpush.msra.mxu0 %v1347
    %1670 = vmatpush.msra.mxu0 %v1345
    %1671 = vmatmul.f32.gmra.mxu0 %v1569
    %v1672 = vpop.f32.mrf.mxu0
    %v1673 = vadd.f32 %v1582, %v1672
    %1674 = vmatmul.f32.gmra.mxu0 %v1571
    %v1675 = vpop.f32.mrf.mxu0
    %v1676 = vadd.f32 %v1582, %v1675
    %1677 = vmatmul.f32.gmra.mxu0 %v1573
    %v1678 = vpop.f32.mrf.mxu0
    %v1679 = vadd.f32 %v1582, %v1678
    %1680 = vmatmul.f32.gmra.mxu0 %v1575
    %v1681 = vpop.f32.mrf.mxu0
    %v1682 = vadd.f32 %v1582, %v1681
    %1683 = vdwg.mxu0
    %1684 = vmatpush.msra.mxu0 0.0
    %1685 = vmatpush.msra.mxu0 0.0
    %1686 = vmatpush.msra.mxu0 0.0
    %1687 = vmatpush.msra.mxu0 0.0
    %1688 = vmatpush.msra.mxu0 0.0
    %1689 = vmatpush.msra.mxu0 0.0
    %1690 = vmatpush.msra.mxu0 0.0
    %1691 = vmatpush.msra.mxu0 0.0
    %1692 = vmatpush.msra.mxu0 %v1568
    %1693 = vmatpush.msra.mxu0 %v1567
    %1694 = vmatpush.msra.mxu0 %v1566
    %1695 = vmatpush.msra.mxu0 %v1565
    %1696 = vmatpush.msra.mxu0 %v1564
    %1697 = vmatpush.msra.mxu0 %v1563
    %1698 = vmatpush.msra.mxu0 %v1562
    %1699 = vmatpush.msra.mxu0 %v1561
    %1700 = vmatmul.f32.gmra.mxu0 %v1586
    %v1701 = vpop.f32.mrf.mxu0
    %v1702 = vadd.f32 %v1673, %v1701
    %1703 = vmatmul.f32.gmra.mxu0 %v1589
    %v1704 = vpop.f32.mrf.mxu0
    %v1705 = vadd.f32 %v1676, %v1704
    %1706 = vmatmul.f32.gmra.mxu0 %v1592
    %v1707 = vpop.f32.mrf.mxu0
    %v1708 = vadd.f32 %v1679, %v1707
    %1709 = vmatmul.f32.gmra.mxu0 %v1595
    %v1710 = vpop.f32.mrf.mxu0
    %v1711 = vadd.f32 %v1682, %v1710
    %1712 = vdwg.mxu0
    %v1713 = vtanh.pop %v1644
    %v1714 = vtanh.pop %v1702
    %v1715 = vtanh.pop %v1647
    %v1716 = vtanh.pop %v1705
    %v1717 = vtanh.pop %v1650
    %v1718 = vtanh.pop %v1708
    %v1719 = vtanh.pop %v1653
    %v1720 = vtanh.pop %v1711
    %1721 = vst [vmem:[#allocation13] sm:$0xff] %v1713
    %1722 = vst [vmem:[#allocation13 + $0x8] sm:$0xff] %v1714
    %1723 = vst [vmem:[#allocation13 + $0x10] sm:$0xff] %v1715
    %1724 = vst [vmem:[#allocation13 + $0x18] sm:$0xff] %v1716
    %1725 = vst [vmem:[#allocation13 + $0x20] sm:$0xff] %v1717
    %1726 = vst [vmem:[#allocation13 + $0x28] sm:$0xff] %v1718
    %1727 = vst [vmem:[#allocation13 + $0x30] sm:$0xff] %v1719
    %1728 = vst [vmem:[#allocation13 + $0x38] sm:$0xff] %v1720
    // Predicated region
    $region58: #{tpu_custom_call.1} parent=1 // pred_check
      _
    $region59: #{tpu_custom_call.1} parent=1 // pred_check_branch
      %1730 = sbr.rel (0) target = $region61
    $region60: #{tpu_custom_call.1} parent=1 // pred_region
      %1732 = vsyncadd [#allocation6], 0
      %s1734 = sshll.u32 [#allocation13], 4
      %s1735 = int_to_ptr.vmem [resolvable:$true] %s1734
      %s1736 = sshll.u32 %s9, 4
      %s1737 = int_to_ptr.hbm [resolvable:$true] %s1736
      %1739 = dma.vmem_to_hbm [thread:$0]  %s1735, 1024, %s1737, [#allocation6]
    $region61: #{tpu_custom_call.1} parent=1 // pred_fallthru
      _
    // Predicated region
    $region62: #{tpu_custom_call.1} parent=1 // pred_check
      _
    $region63: #{tpu_custom_call.1} parent=1 // pred_check_branch
      %1741 = sbr.rel (0) target = $region65
    $region64: #{tpu_custom_call.1} parent=1 // pred_region
      %1743 = dma.done [#allocation6], 1024
    $region65: #{tpu_custom_call.1} parent=1 // pred_fallthru
      _
    %1744 = vsyncpa [#allocation5], 1
    %1745 = vsyncpa [#allocation8], 1
    %1746 = vsyncpa [#allocation11], 1
    %1747 = vsyncpa [#allocation6], 1

</llo_original>
